<compile_context>
chip_gen: v6e
topology: v6e:2x2x1
jax: 0.10.0
libtpu: 0.0.40
codegen_flags: <defaults>
</compile_context>

<pallas_src>
import functools

import jax
import jax.numpy as jnp
from jax import lax
from jax.experimental import pallas as pl
from jax.experimental.pallas import tpu as pltpu


def _round_up(x, m):
    return (x + m - 1) // m * m


def _gru_chunk_kernel(gx_ref, len_ref, wh_ref, bhh_ref, out_ref, hN_ref,
                      h_scr, *, tc, hp):
    """One grid step = one batch block x one chunk of `tc` timesteps."""
    ti = pl.program_id(1)
    nt = pl.num_programs(1)

    @pl.when(ti == 0)
    def _():
        h_scr[...] = jnp.zeros_like(h_scr)

    # Grid-invariant operands, hoisted out of the time loop.
    wh = wh_ref[...]                    # (Hp, 3Hp) bf16, resident
    bh = bhh_ref[...]                   # (1, 3Hp)  f32
    lv = len_ref[...]                   # (Bt, 1)   int32
    t0 = ti * tc

    def step(lt, h):
        # gx already contains x @ Wi + b_ih (precomputed outside the kernel).
        gx = gx_ref[lt]                                        # (Bt, 3Hp) f32
        gh = jnp.dot(h.astype(jnp.bfloat16), wh,
                     preferred_element_type=jnp.float32) + bh  # (Bt, 3Hp) f32
        # PyTorch GRU gate order r, z, n (lane-aligned 128-wide slices).
        r = jax.nn.sigmoid(gx[:, :hp] + gh[:, :hp])
        z = jax.nn.sigmoid(gx[:, hp:2 * hp] + gh[:, hp:2 * hp])
        n = jnp.tanh(gx[:, 2 * hp:] + r * gh[:, 2 * hp:])
        h_new = (1.0 - z) * n + z * h
        valid = lv > (t0 + lt)                                 # (Bt, 1) bool
        out_ref[lt] = jnp.where(valid, h_new, 0.0).astype(out_ref.dtype)
        return jnp.where(valid, h_new, h)

    h_last = lax.fori_loop(0, tc, step, h_scr[...], unroll=True)
    h_scr[...] = h_last

    @pl.when(ti == nt - 1)
    def _():
        hN_ref[...] = h_last.astype(hN_ref.dtype)


def gru_forward(x, lengths, w_ih, w_hh, b_ih, b_hh):
    """Masked single-layer unidirectional GRU (PyTorch weight layout).

    x: (B, T, I) float, lengths: (B,) int32.
    Returns outputs (B, T, H) with zeros at padded steps and final hidden (B, H).
    """
    B, T, I = x.shape
    H = w_ih.shape[0] // 3
    f32 = jnp.float32

    # ----- hardware-friendly padding / tiling --------------------------------
    Hp = _round_up(H, 128)               # lane-dense gates & outputs
    Bt = min(_round_up(B, 8), 64)        # sublane tile per batch grid block
    Bp = _round_up(B, Bt)
    Tc = min(T, 32)                      # timesteps per grid step
    Tp = _round_up(T, Tc)
    nb, nt = Bp // Bt, Tp // Tc

    # ----- weight / bias packing: fused [r|z|n] gate blocks, each Hp wide ----
    def pack_gate_cols(w):               # (3H, C) -> (C, 3Hp)
        return jnp.concatenate(
            [jnp.pad(w[g * H:(g + 1) * H, :].T, ((0, 0), (0, Hp - H)))
             for g in range(3)], axis=1)

    def pack_gate_bias(b):               # (3H,) -> (1, 3Hp)
        return jnp.concatenate(
            [jnp.pad(b[g * H:(g + 1) * H], (0, Hp - H)) for g in range(3)]
        )[None, :]

    wi = pack_gate_cols(w_ih).astype(f32)                           # (I, 3Hp)
    wh = jnp.pad(pack_gate_cols(w_hh), ((0, Hp - H), (0, 0)))       # (Hp, 3Hp)
    bih = pack_gate_bias(b_ih).astype(f32)                          # (1, 3Hp)
    bhh = pack_gate_bias(b_hh).astype(f32)                          # (1, 3Hp)

    # ----- time-major, padded activations ------------------------------------
    xt = jnp.transpose(x, (1, 0, 2)).astype(f32)                    # (T, B, I)
    xt = jnp.pad(xt, ((0, Tp - T), (0, Bp - B), (0, 0)))
    lens = jnp.pad(lengths.astype(jnp.int32), (0, Bp - B)).reshape(Bp, 1)

    # Hoisted input projection: one large MXU-friendly GEMM (bf16 in, f32 acc),
    # with b_ih folded in.  The sequential kernel only sees (T, B, 3Hp).
    gx = jnp.dot(xt.reshape(Tp * Bp, I).astype(jnp.bfloat16),
                 wi.astype(jnp.bfloat16),
                 preferred_element_type=f32).reshape(Tp, Bp, 3 * Hp) + bih

    kernel = functools.partial(_gru_chunk_kernel, tc=Tc, hp=Hp)

    grid_spec = pltpu.PrefetchScalarGridSpec(
        num_scalar_prefetch=0,
        grid=(nb, nt),                                  # (batch blocks, time chunks)
        in_specs=[
            pl.BlockSpec((Tc, Bt, 3 * Hp), lambda bi, ti: (ti, bi, 0)),  # gates_x
            pl.BlockSpec((Bt, 1), lambda bi, ti: (bi, 0)),               # lengths
            pl.BlockSpec((Hp, 3 * Hp), lambda bi, ti: (0, 0)),           # Wh (bf16)
            pl.BlockSpec((1, 3 * Hp), lambda bi, ti: (0, 0)),            # b_hh
        ],
        out_specs=[
            pl.BlockSpec((Tc, Bt, Hp), lambda bi, ti: (ti, bi, 0)),      # outputs
            pl.BlockSpec((Bt, Hp), lambda bi, ti: (bi, 0)),              # final h
        ],
        scratch_shapes=[pltpu.VMEM((Bt, Hp), jnp.float32)],              # carried h
    )

    out_t, h_n = pl.pallas_call(
        kernel,
        out_shape=(jax.ShapeDtypeStruct((Tp, Bp, Hp), f32),
                   jax.ShapeDtypeStruct((Bp, Hp), f32)),
        grid_spec=grid_spec,
        compiler_params=pltpu.CompilerParams(
            dimension_semantics=("parallel", "arbitrary"),
            vmem_limit_bytes=32 * 1024 * 1024),
    )(gx, lens, wh.astype(jnp.bfloat16), bhh)

    outputs = jnp.transpose(out_t, (1, 0, 2))[:B, :T, :H]
    return outputs, h_n[:B, :H]


def init_params(key, vocab_size, emb_dim, hidden_size):
    ks = jax.random.split(key, 9)

    def u(k, shape, fan):
        bound = 1.0 / jnp.sqrt(jnp.float32(fan))
        return jax.random.uniform(k, shape, jnp.float32, -bound, bound)

    return {
        "embedding":  u(ks[0], (vocab_size, emb_dim), emb_dim),
        "sub_w_ih":   u(ks[1], (3 * hidden_size, emb_dim), hidden_size),
        "sub_w_hh":   u(ks[2], (3 * hidden_size, hidden_size), hidden_size),
        "sub_b_ih":   u(ks[3], (3 * hidden_size,), hidden_size),
        "sub_b_hh":   u(ks[4], (3 * hidden_size,), hidden_size),
        "hiera_w_ih": u(ks[5], (3 * hidden_size, hidden_size), hidden_size),
        "hiera_w_hh": u(ks[6], (3 * hidden_size, hidden_size), hidden_size),
        "hiera_b_ih": u(ks[7], (3 * hidden_size,), hidden_size),
        "hiera_b_hh": u(ks[8], (3 * hidden_size,), hidden_size),
    }


def hrnn_encoder_forward(indices, lengths, params):
    """HRNNEncoder.forward with features=None, return_last_sub_outputs=False.

    indices: (batch, max_hiera_len, max_sub_len) int32
    lengths: (batch, max_hiera_len) int32
    Returns (hiera_outputs, hiera_hidden, None); hiera_hidden is (1, batch, H).
    """
    B, Hh, S = indices.shape
    hiera_lengths = (lengths > 0).astype(jnp.int32).sum(axis=1)      # (B,)
    flat_idx = indices.reshape(B * Hh, S)
    sub_lengths = lengths.reshape(B * Hh)

    # sub encoder: embedding lookup (XLA gather glue) + GRU recurrence (Pallas)
    sub_x = jnp.take(params["embedding"], flat_idx, axis=0)          # (B*Hh, S, E)
    _sub_outputs, sub_h_n = gru_forward(
        sub_x, sub_lengths,
        params["sub_w_ih"], params["sub_w_hh"],
        params["sub_b_ih"], params["sub_b_hh"])
    # sub_hidden[-1].view(batch, max_hiera_len, -1)
    sub_hidden = sub_h_n.reshape(B, Hh, -1)                          # (B, Hh, H)

    # hiera encoder: same Pallas GRU over the hierarchy axis (single grid step
    # at these sizes, so per-step pipeline overhead is amortized away).
    hiera_outputs, hiera_h_n = gru_forward(
        sub_hidden, hiera_lengths,
        params["hiera_w_ih"], params["hiera_w_hh"],
        params["hiera_b_ih"], params["hiera_b_hh"])

    # TODO(synk): return_last_sub_outputs=True path (dynamic-length slice
    # last_sub_outputs[:, :max_len]) has a data-dependent output shape and is
    # not implemented; features concat path not exercised (features=None).
    return hiera_outputs, hiera_h_n[None], None


if __name__ == "__main__":
    VOCAB, EMB, HID = 50, 32, 32
    B, MAX_HIERA, MAX_SUB = 2, 4, 8

    key = jax.random.PRNGKey(0)
    k_param, k_idx = jax.random.split(key)
    params = init_params(k_param, VOCAB, EMB, HID)

    lengths = jnp.array([[8, 5, 3, 0],
                         [6, 8, 0, 0]], dtype=jnp.int32)
    indices = jax.random.randint(
        k_idx, (B, MAX_HIERA, MAX_SUB), 1, VOCAB, dtype=jnp.int32)
    step_mask = (jnp.arange(MAX_SUB)[None, None, :] < lengths[:, :, None])
    indices = jnp.where(step_mask, indices, 0)

    fwd = jax.jit(hrnn_encoder_forward)
    hiera_outputs, hiera_hidden, last = fwd(indices, lengths, params)
    jax.block_until_ready((hiera_outputs, hiera_hidden))

    assert hiera_outputs.shape == (B, MAX_HIERA, HID)
    assert hiera_hidden.shape == (1, B, HID)
    assert last is None
    assert bool(jnp.all(jnp.isfinite(hiera_outputs)))
    print("KERNEL_OK")
</pallas_src>

<mosaic_0001>
module attributes {stable_mosaic.version = 11 : i64} {
  func.func @_gru_chunk_kernel(%arg0: i32, %arg1: i32, %arg2: memref<4x8x384xf32, #tpu.memory_space<vmem>>, %arg3: memref<8x1xi32, #tpu.memory_space<vmem>>, %arg4: memref<128x384xbf16, #tpu.memory_space<vmem>>, %arg5: memref<1x384xf32, #tpu.memory_space<vmem>>, %arg6: memref<4x8x128xf32, #tpu.memory_space<vmem>>, %arg7: memref<8x128xf32, #tpu.memory_space<vmem>>, %arg8: memref<8x128xf32, #tpu.memory_space<vmem>>) attributes {dimension_semantics = [#tpu.dimension_semantics<parallel>, #tpu.dimension_semantics<arbitrary>], iteration_bounds = array<i64: 1, 1>, scalar_prefetch = 0 : i64, scratch_operands = 1 : i64, tpu.core_type = #tpu.core_type<tc>, window_params = [{transform_indices = @transform_0, window_bounds = array<i64: 4, 8, 384>}, {transform_indices = @transform_1, window_bounds = array<i64: 8, 1>}, {pipeline_mode = #tpu.pipeline_mode<synchronous>, transform_indices = @transform_2, window_bounds = array<i64: 128, 384>}, {pipeline_mode = #tpu.pipeline_mode<synchronous>, transform_indices = @transform_3, window_bounds = array<i64: 1, 384>}, {transform_indices = @transform_4, window_bounds = array<i64: 4, 8, 128>}, {transform_indices = @transform_5, window_bounds = array<i64: 8, 128>}]} {
    %c0_i32 = arith.constant 0 : i32
    %0 = arith.cmpi eq, %arg1, %c0_i32 : i32
    %1 = arith.extui %0 : i1 to i32
    %c0_i32_0 = arith.constant 0 : i32
    %2 = arith.cmpi ne, %1, %c0_i32_0 : i32
    scf.if %2 {
      %cst_49 = arith.constant 0.000000e+00 : f32
      %200 = vector.broadcast %cst_49 : f32 to vector<8x128xf32>
      %c0_50 = arith.constant 0 : index
      %c0_51 = arith.constant 0 : index
      %201 = vector.load %arg8[%c0_50, %c0_51] : memref<8x128xf32, #tpu.memory_space<vmem>>, vector<8x128xf32>
      tpu.vector_store %arg8[%c0_50, %c0_51], %200 {strides = array<i32>} : memref<8x128xf32, #tpu.memory_space<vmem>>, vector<8x128xf32>,
    } else {
    }
    %c0 = arith.constant 0 : index
    %c0_1 = arith.constant 0 : index
    %3 = vector.load %arg4[%c0, %c0_1] : memref<128x384xbf16, #tpu.memory_space<vmem>>, vector<128x384xbf16>
    %c0_2 = arith.constant 0 : index
    %c0_3 = arith.constant 0 : index
    %4 = vector.load %arg5[%c0_2, %c0_3] : memref<1x384xf32, #tpu.memory_space<vmem>>, vector<1x384xf32>
    %c0_4 = arith.constant 0 : index
    %c0_5 = arith.constant 0 : index
    %5 = vector.load %arg3[%c0_4, %c0_5] : memref<8x1xi32, #tpu.memory_space<vmem>>, vector<8x1xi32>
    %c4_i32 = arith.constant 4 : i32
    %6 = arith.muli %arg1, %c4_i32 : i32
    %c0_6 = arith.constant 0 : index
    %c0_7 = arith.constant 0 : index
    %7 = vector.load %arg8[%c0_6, %c0_7] : memref<8x128xf32, #tpu.memory_space<vmem>>, vector<8x128xf32>
    %c0_i32_8 = arith.constant 0 : i32
    %8 = arith.index_cast %c0_i32_8 : i32 to index
    %c0_9 = arith.constant 0 : index
    %c0_10 = arith.constant 0 : index
    %9 = vector.load %arg2[%8, %c0_9, %c0_10] : memref<4x8x384xf32, #tpu.memory_space<vmem>>, vector<1x8x384xf32>
    %10 = vector.shape_cast %9 : vector<1x8x384xf32> to vector<8x384xf32>
    %11 = arith.truncf %7 : vector<8x128xf32> to vector<8x128xbf16>
    %cst = arith.constant dense<0.000000e+00> : vector<8x384xf32>
    %12 = tpu.matmul %11, %3, %cst {dimension_numbers = #tpu.dot_dimension_numbers<[1], [0], [0], [1], [0, 0, 1, 1], [], []>} : vector<8x128xbf16>, vector<128x384xbf16>, vector<8x384xf32> -> vector<8x384xf32>
    %13 = vector.broadcast %4 : vector<1x384xf32> to vector<8x384xf32>
    %14 = arith.addf %12, %13 : vector<8x384xf32>
    %15 = vector.extract_strided_slice %10 {offsets = [0, 0], sizes = [8, 128], strides = [1, 1]} : vector<8x384xf32> to vector<8x128xf32>
    %16 = vector.extract_strided_slice %14 {offsets = [0, 0], sizes = [8, 128], strides = [1, 1]} : vector<8x384xf32> to vector<8x128xf32>
    %17 = arith.addf %15, %16 : vector<8x128xf32>
    %18 = arith.negf %17 : vector<8x128xf32>
    %19 = math.exp %18 : vector<8x128xf32>
    %cst_11 = arith.constant 1.000000e+00 : f32
    %20 = vector.broadcast %cst_11 : f32 to vector<8x128xf32>
    %21 = arith.addf %20, %19 : vector<8x128xf32>
    %22 = arith.divf %20, %21 : vector<8x128xf32>
    %23 = vector.extract_strided_slice %10 {offsets = [0, 128], sizes = [8, 128], strides = [1, 1]} : vector<8x384xf32> to vector<8x128xf32>
    %24 = vector.extract_strided_slice %14 {offsets = [0, 128], sizes = [8, 128], strides = [1, 1]} : vector<8x384xf32> to vector<8x128xf32>
    %25 = arith.addf %23, %24 : vector<8x128xf32>
    %26 = arith.negf %25 : vector<8x128xf32>
    %27 = math.exp %26 : vector<8x128xf32>
    %cst_12 = arith.constant 1.000000e+00 : f32
    %28 = vector.broadcast %cst_12 : f32 to vector<8x128xf32>
    %29 = arith.addf %28, %27 : vector<8x128xf32>
    %30 = arith.divf %28, %29 : vector<8x128xf32>
    %31 = vector.extract_strided_slice %10 {offsets = [0, 256], sizes = [8, 128], strides = [1, 1]} : vector<8x384xf32> to vector<8x128xf32>
    %32 = vector.extract_strided_slice %14 {offsets = [0, 256], sizes = [8, 128], strides = [1, 1]} : vector<8x384xf32> to vector<8x128xf32>
    %33 = arith.mulf %22, %32 : vector<8x128xf32>
    %34 = arith.addf %31, %33 : vector<8x128xf32>
    %35 = math.tanh %34 : vector<8x128xf32>
    %cst_13 = arith.constant 1.000000e+00 : f32
    %36 = vector.broadcast %cst_13 : f32 to vector<8x128xf32>
    %37 = arith.subf %36, %30 : vector<8x128xf32>
    %38 = arith.mulf %37, %35 : vector<8x128xf32>
    %39 = arith.mulf %30, %7 : vector<8x128xf32>
    %40 = arith.addf %38, %39 : vector<8x128xf32>
    %41 = arith.addi %6, %c0_i32_8 : i32
    %42 = vector.broadcast %41 : i32 to vector<8x1xi32>
    %43 = arith.cmpi sgt, %5, %42 : vector<8x1xi32>
    %cst_14 = arith.constant 0.000000e+00 : f32
    %44 = vector.shape_cast %43 : vector<8x1xi1> to vector<8x1xi1>
    %45 = vector.broadcast %44 : vector<8x1xi1> to vector<8x128xi1>
    %46 = vector.broadcast %cst_14 : f32 to vector<8x128xf32>
    %47 = arith.select %45, %40, %46 : vector<8x128xi1>, vector<8x128xf32>
    %48 = arith.index_cast %c0_i32_8 : i32 to index
    %c0_15 = arith.constant 0 : index
    %c0_16 = arith.constant 0 : index
    %49 = vector.load %arg6[%48, %c0_15, %c0_16] : memref<4x8x128xf32, #tpu.memory_space<vmem>>, vector<1x8x128xf32>
    %50 = vector.shape_cast %49 : vector<1x8x128xf32> to vector<8x128xf32>
    %51 = vector.shape_cast %47 : vector<8x128xf32> to vector<1x8x128xf32>
    tpu.vector_store %arg6[%48, %c0_15, %c0_16], %51 {strides = array<i32>} : memref<4x8x128xf32, #tpu.memory_space<vmem>>, vector<1x8x128xf32>,
    %52 = vector.shape_cast %43 : vector<8x1xi1> to vector<8x1xi1>
    %53 = vector.broadcast %52 : vector<8x1xi1> to vector<8x128xi1>
    %54 = arith.select %53, %40, %7 : vector<8x128xi1>, vector<8x128xf32>
    %c1_i32 = arith.constant 1 : i32
    %55 = arith.index_cast %c1_i32 : i32 to index
    %c0_17 = arith.constant 0 : index
    %c0_18 = arith.constant 0 : index
    %56 = vector.load %arg2[%55, %c0_17, %c0_18] : memref<4x8x384xf32, #tpu.memory_space<vmem>>, vector<1x8x384xf32>
    %57 = vector.shape_cast %56 : vector<1x8x384xf32> to vector<8x384xf32>
    %58 = arith.truncf %54 : vector<8x128xf32> to vector<8x128xbf16>
    %cst_19 = arith.constant dense<0.000000e+00> : vector<8x384xf32>
    %59 = tpu.matmul %58, %3, %cst_19 {dimension_numbers = #tpu.dot_dimension_numbers<[1], [0], [0], [1], [0, 0, 1, 1], [], []>} : vector<8x128xbf16>, vector<128x384xbf16>, vector<8x384xf32> -> vector<8x384xf32>
    %60 = vector.broadcast %4 : vector<1x384xf32> to vector<8x384xf32>
    %61 = arith.addf %59, %60 : vector<8x384xf32>
    %62 = vector.extract_strided_slice %57 {offsets = [0, 0], sizes = [8, 128], strides = [1, 1]} : vector<8x384xf32> to vector<8x128xf32>
    %63 = vector.extract_strided_slice %61 {offsets = [0, 0], sizes = [8, 128], strides = [1, 1]} : vector<8x384xf32> to vector<8x128xf32>
    %64 = arith.addf %62, %63 : vector<8x128xf32>
    %65 = arith.negf %64 : vector<8x128xf32>
    %66 = math.exp %65 : vector<8x128xf32>
    %cst_20 = arith.constant 1.000000e+00 : f32
    %67 = vector.broadcast %cst_20 : f32 to vector<8x128xf32>
    %68 = arith.addf %67, %66 : vector<8x128xf32>
    %69 = arith.divf %67, %68 : vector<8x128xf32>
    %70 = vector.extract_strided_slice %57 {offsets = [0, 128], sizes = [8, 128], strides = [1, 1]} : vector<8x384xf32> to vector<8x128xf32>
    %71 = vector.extract_strided_slice %61 {offsets = [0, 128], sizes = [8, 128], strides = [1, 1]} : vector<8x384xf32> to vector<8x128xf32>
    %72 = arith.addf %70, %71 : vector<8x128xf32>
    %73 = arith.negf %72 : vector<8x128xf32>
    %74 = math.exp %73 : vector<8x128xf32>
    %cst_21 = arith.constant 1.000000e+00 : f32
    %75 = vector.broadcast %cst_21 : f32 to vector<8x128xf32>
    %76 = arith.addf %75, %74 : vector<8x128xf32>
    %77 = arith.divf %75, %76 : vector<8x128xf32>
    %78 = vector.extract_strided_slice %57 {offsets = [0, 256], sizes = [8, 128], strides = [1, 1]} : vector<8x384xf32> to vector<8x128xf32>
    %79 = vector.extract_strided_slice %61 {offsets = [0, 256], sizes = [8, 128], strides = [1, 1]} : vector<8x384xf32> to vector<8x128xf32>
    %80 = arith.mulf %69, %79 : vector<8x128xf32>
    %81 = arith.addf %78, %80 : vector<8x128xf32>
    %82 = math.tanh %81 : vector<8x128xf32>
    %cst_22 = arith.constant 1.000000e+00 : f32
    %83 = vector.broadcast %cst_22 : f32 to vector<8x128xf32>
    %84 = arith.subf %83, %77 : vector<8x128xf32>
    %85 = arith.mulf %84, %82 : vector<8x128xf32>
    %86 = arith.mulf %77, %54 : vector<8x128xf32>
    %87 = arith.addf %85, %86 : vector<8x128xf32>
    %88 = arith.addi %6, %c1_i32 : i32
    %89 = vector.broadcast %88 : i32 to vector<8x1xi32>
    %90 = arith.cmpi sgt, %5, %89 : vector<8x1xi32>
    %cst_23 = arith.constant 0.000000e+00 : f32
    %91 = vector.shape_cast %90 : vector<8x1xi1> to vector<8x1xi1>
    %92 = vector.broadcast %91 : vector<8x1xi1> to vector<8x128xi1>
    %93 = vector.broadcast %cst_23 : f32 to vector<8x128xf32>
    %94 = arith.select %92, %87, %93 : vector<8x128xi1>, vector<8x128xf32>
    %95 = arith.index_cast %c1_i32 : i32 to index
    %c0_24 = arith.constant 0 : index
    %c0_25 = arith.constant 0 : index
    %96 = vector.load %arg6[%95, %c0_24, %c0_25] : memref<4x8x128xf32, #tpu.memory_space<vmem>>, vector<1x8x128xf32>
    %97 = vector.shape_cast %96 : vector<1x8x128xf32> to vector<8x128xf32>
    %98 = vector.shape_cast %94 : vector<8x128xf32> to vector<1x8x128xf32>
    tpu.vector_store %arg6[%95, %c0_24, %c0_25], %98 {strides = array<i32>} : memref<4x8x128xf32, #tpu.memory_space<vmem>>, vector<1x8x128xf32>,
    %99 = vector.shape_cast %90 : vector<8x1xi1> to vector<8x1xi1>
    %100 = vector.broadcast %99 : vector<8x1xi1> to vector<8x128xi1>
    %101 = arith.select %100, %87, %54 : vector<8x128xi1>, vector<8x128xf32>
    %c2_i32 = arith.constant 2 : i32
    %102 = arith.index_cast %c2_i32 : i32 to index
    %c0_26 = arith.constant 0 : index
    %c0_27 = arith.constant 0 : index
    %103 = vector.load %arg2[%102, %c0_26, %c0_27] : memref<4x8x384xf32, #tpu.memory_space<vmem>>, vector<1x8x384xf32>
    %104 = vector.shape_cast %103 : vector<1x8x384xf32> to vector<8x384xf32>
    %105 = arith.truncf %101 : vector<8x128xf32> to vector<8x128xbf16>
    %cst_28 = arith.constant dense<0.000000e+00> : vector<8x384xf32>
    %106 = tpu.matmul %105, %3, %cst_28 {dimension_numbers = #tpu.dot_dimension_numbers<[1], [0], [0], [1], [0, 0, 1, 1], [], []>} : vector<8x128xbf16>, vector<128x384xbf16>, vector<8x384xf32> -> vector<8x384xf32>
    %107 = vector.broadcast %4 : vector<1x384xf32> to vector<8x384xf32>
    %108 = arith.addf %106, %107 : vector<8x384xf32>
    %109 = vector.extract_strided_slice %104 {offsets = [0, 0], sizes = [8, 128], strides = [1, 1]} : vector<8x384xf32> to vector<8x128xf32>
    %110 = vector.extract_strided_slice %108 {offsets = [0, 0], sizes = [8, 128], strides = [1, 1]} : vector<8x384xf32> to vector<8x128xf32>
    %111 = arith.addf %109, %110 : vector<8x128xf32>
    %112 = arith.negf %111 : vector<8x128xf32>
    %113 = math.exp %112 : vector<8x128xf32>
    %cst_29 = arith.constant 1.000000e+00 : f32
    %114 = vector.broadcast %cst_29 : f32 to vector<8x128xf32>
    %115 = arith.addf %114, %113 : vector<8x128xf32>
    %116 = arith.divf %114, %115 : vector<8x128xf32>
    %117 = vector.extract_strided_slice %104 {offsets = [0, 128], sizes = [8, 128], strides = [1, 1]} : vector<8x384xf32> to vector<8x128xf32>
    %118 = vector.extract_strided_slice %108 {offsets = [0, 128], sizes = [8, 128], strides = [1, 1]} : vector<8x384xf32> to vector<8x128xf32>
    %119 = arith.addf %117, %118 : vector<8x128xf32>
    %120 = arith.negf %119 : vector<8x128xf32>
    %121 = math.exp %120 : vector<8x128xf32>
    %cst_30 = arith.constant 1.000000e+00 : f32
    %122 = vector.broadcast %cst_30 : f32 to vector<8x128xf32>
    %123 = arith.addf %122, %121 : vector<8x128xf32>
    %124 = arith.divf %122, %123 : vector<8x128xf32>
    %125 = vector.extract_strided_slice %104 {offsets = [0, 256], sizes = [8, 128], strides = [1, 1]} : vector<8x384xf32> to vector<8x128xf32>
    %126 = vector.extract_strided_slice %108 {offsets = [0, 256], sizes = [8, 128], strides = [1, 1]} : vector<8x384xf32> to vector<8x128xf32>
    %127 = arith.mulf %116, %126 : vector<8x128xf32>
    %128 = arith.addf %125, %127 : vector<8x128xf32>
    %129 = math.tanh %128 : vector<8x128xf32>
    %cst_31 = arith.constant 1.000000e+00 : f32
    %130 = vector.broadcast %cst_31 : f32 to vector<8x128xf32>
    %131 = arith.subf %130, %124 : vector<8x128xf32>
    %132 = arith.mulf %131, %129 : vector<8x128xf32>
    %133 = arith.mulf %124, %101 : vector<8x128xf32>
    %134 = arith.addf %132, %133 : vector<8x128xf32>
    %135 = arith.addi %6, %c2_i32 : i32
    %136 = vector.broadcast %135 : i32 to vector<8x1xi32>
    %137 = arith.cmpi sgt, %5, %136 : vector<8x1xi32>
    %cst_32 = arith.constant 0.000000e+00 : f32
    %138 = vector.shape_cast %137 : vector<8x1xi1> to vector<8x1xi1>
    %139 = vector.broadcast %138 : vector<8x1xi1> to vector<8x128xi1>
    %140 = vector.broadcast %cst_32 : f32 to vector<8x128xf32>
    %141 = arith.select %139, %134, %140 : vector<8x128xi1>, vector<8x128xf32>
    %142 = arith.index_cast %c2_i32 : i32 to index
    %c0_33 = arith.constant 0 : index
    %c0_34 = arith.constant 0 : index
    %143 = vector.load %arg6[%142, %c0_33, %c0_34] : memref<4x8x128xf32, #tpu.memory_space<vmem>>, vector<1x8x128xf32>
    %144 = vector.shape_cast %143 : vector<1x8x128xf32> to vector<8x128xf32>
    %145 = vector.shape_cast %141 : vector<8x128xf32> to vector<1x8x128xf32>
    tpu.vector_store %arg6[%142, %c0_33, %c0_34], %145 {strides = array<i32>} : memref<4x8x128xf32, #tpu.memory_space<vmem>>, vector<1x8x128xf32>,
    %146 = vector.shape_cast %137 : vector<8x1xi1> to vector<8x1xi1>
    %147 = vector.broadcast %146 : vector<8x1xi1> to vector<8x128xi1>
    %148 = arith.select %147, %134, %101 : vector<8x128xi1>, vector<8x128xf32>
    %c3_i32 = arith.constant 3 : i32
    %149 = arith.index_cast %c3_i32 : i32 to index
    %c0_35 = arith.constant 0 : index
    %c0_36 = arith.constant 0 : index
    %150 = vector.load %arg2[%149, %c0_35, %c0_36] : memref<4x8x384xf32, #tpu.memory_space<vmem>>, vector<1x8x384xf32>
    %151 = vector.shape_cast %150 : vector<1x8x384xf32> to vector<8x384xf32>
    %152 = arith.truncf %148 : vector<8x128xf32> to vector<8x128xbf16>
    %cst_37 = arith.constant dense<0.000000e+00> : vector<8x384xf32>
    %153 = tpu.matmul %152, %3, %cst_37 {dimension_numbers = #tpu.dot_dimension_numbers<[1], [0], [0], [1], [0, 0, 1, 1], [], []>} : vector<8x128xbf16>, vector<128x384xbf16>, vector<8x384xf32> -> vector<8x384xf32>
    %154 = vector.broadcast %4 : vector<1x384xf32> to vector<8x384xf32>
    %155 = arith.addf %153, %154 : vector<8x384xf32>
    %156 = vector.extract_strided_slice %151 {offsets = [0, 0], sizes = [8, 128], strides = [1, 1]} : vector<8x384xf32> to vector<8x128xf32>
    %157 = vector.extract_strided_slice %155 {offsets = [0, 0], sizes = [8, 128], strides = [1, 1]} : vector<8x384xf32> to vector<8x128xf32>
    %158 = arith.addf %156, %157 : vector<8x128xf32>
    %159 = arith.negf %158 : vector<8x128xf32>
    %160 = math.exp %159 : vector<8x128xf32>
    %cst_38 = arith.constant 1.000000e+00 : f32
    %161 = vector.broadcast %cst_38 : f32 to vector<8x128xf32>
    %162 = arith.addf %161, %160 : vector<8x128xf32>
    %163 = arith.divf %161, %162 : vector<8x128xf32>
    %164 = vector.extract_strided_slice %151 {offsets = [0, 128], sizes = [8, 128], strides = [1, 1]} : vector<8x384xf32> to vector<8x128xf32>
    %165 = vector.extract_strided_slice %155 {offsets = [0, 128], sizes = [8, 128], strides = [1, 1]} : vector<8x384xf32> to vector<8x128xf32>
    %166 = arith.addf %164, %165 : vector<8x128xf32>
    %167 = arith.negf %166 : vector<8x128xf32>
    %168 = math.exp %167 : vector<8x128xf32>
    %cst_39 = arith.constant 1.000000e+00 : f32
    %169 = vector.broadcast %cst_39 : f32 to vector<8x128xf32>
    %170 = arith.addf %169, %168 : vector<8x128xf32>
    %171 = arith.divf %169, %170 : vector<8x128xf32>
    %172 = vector.extract_strided_slice %151 {offsets = [0, 256], sizes = [8, 128], strides = [1, 1]} : vector<8x384xf32> to vector<8x128xf32>
    %173 = vector.extract_strided_slice %155 {offsets = [0, 256], sizes = [8, 128], strides = [1, 1]} : vector<8x384xf32> to vector<8x128xf32>
    %174 = arith.mulf %163, %173 : vector<8x128xf32>
    %175 = arith.addf %172, %174 : vector<8x128xf32>
    %176 = math.tanh %175 : vector<8x128xf32>
    %cst_40 = arith.constant 1.000000e+00 : f32
    %177 = vector.broadcast %cst_40 : f32 to vector<8x128xf32>
    %178 = arith.subf %177, %171 : vector<8x128xf32>
    %179 = arith.mulf %178, %176 : vector<8x128xf32>
    %180 = arith.mulf %171, %148 : vector<8x128xf32>
    %181 = arith.addf %179, %180 : vector<8x128xf32>
    %182 = arith.addi %6, %c3_i32 : i32
    %183 = vector.broadcast %182 : i32 to vector<8x1xi32>
    %184 = arith.cmpi sgt, %5, %183 : vector<8x1xi32>
    %cst_41 = arith.constant 0.000000e+00 : f32
    %185 = vector.shape_cast %184 : vector<8x1xi1> to vector<8x1xi1>
    %186 = vector.broadcast %185 : vector<8x1xi1> to vector<8x128xi1>
    %187 = vector.broadcast %cst_41 : f32 to vector<8x128xf32>
    %188 = arith.select %186, %181, %187 : vector<8x128xi1>, vector<8x128xf32>
    %189 = arith.index_cast %c3_i32 : i32 to index
    %c0_42 = arith.constant 0 : index
    %c0_43 = arith.constant 0 : index
    %190 = vector.load %arg6[%189, %c0_42, %c0_43] : memref<4x8x128xf32, #tpu.memory_space<vmem>>, vector<1x8x128xf32>
    %191 = vector.shape_cast %190 : vector<1x8x128xf32> to vector<8x128xf32>
    %192 = vector.shape_cast %188 : vector<8x128xf32> to vector<1x8x128xf32>
    tpu.vector_store %arg6[%189, %c0_42, %c0_43], %192 {strides = array<i32>} : memref<4x8x128xf32, #tpu.memory_space<vmem>>, vector<1x8x128xf32>,
    %193 = vector.shape_cast %184 : vector<8x1xi1> to vector<8x1xi1>
    %194 = vector.broadcast %193 : vector<8x1xi1> to vector<8x128xi1>
    %195 = arith.select %194, %181, %148 : vector<8x128xi1>, vector<8x128xf32>
    %c4_i32_44 = arith.constant 4 : i32
    %c0_45 = arith.constant 0 : index
    %c0_46 = arith.constant 0 : index
    %196 = vector.load %arg8[%c0_45, %c0_46] : memref<8x128xf32, #tpu.memory_space<vmem>>, vector<8x128xf32>
    tpu.vector_store %arg8[%c0_45, %c0_46], %195 {strides = array<i32>} : memref<8x128xf32, #tpu.memory_space<vmem>>, vector<8x128xf32>,
    %c0_i32_47 = arith.constant 0 : i32
    %197 = arith.cmpi eq, %arg1, %c0_i32_47 : i32
    %198 = arith.extui %197 : i1 to i32
    %c0_i32_48 = arith.constant 0 : i32
    %199 = arith.cmpi ne, %198, %c0_i32_48 : i32
    scf.if %199 {
      %c0_49 = arith.constant 0 : index
      %c0_50 = arith.constant 0 : index
      %200 = vector.load %arg7[%c0_49, %c0_50] : memref<8x128xf32, #tpu.memory_space<vmem>>, vector<8x128xf32>
      tpu.vector_store %arg7[%c0_49, %c0_50], %195 {strides = array<i32>} : memref<8x128xf32, #tpu.memory_space<vmem>>, vector<8x128xf32>,
    } else {
    }
    return
  }
  func.func @transform_0(%arg0: i32, %arg1: i32) -> (i32, i32, i32) {
    %c0_i32 = arith.constant 0 : i32
    %c0_i32_0 = arith.constant 0 : i32
    return %arg1, %arg0, %c0_i32 : i32, i32, i32
  }
  func.func @transform_1(%arg0: i32, %arg1: i32) -> (i32, i32) {
    %c0_i32 = arith.constant 0 : i32
    %c0_i32_0 = arith.constant 0 : i32
    return %arg0, %c0_i32 : i32, i32
  }
  func.func @transform_2(%arg0: i32, %arg1: i32) -> (i32, i32) {
    %c0_i32 = arith.constant 0 : i32
    %c0_i32_0 = arith.constant 0 : i32
    %c0_i32_1 = arith.constant 0 : i32
    return %c0_i32, %c0_i32_0 : i32, i32
  }
  func.func @transform_3(%arg0: i32, %arg1: i32) -> (i32, i32) {
    %c0_i32 = arith.constant 0 : i32
    %c0_i32_0 = arith.constant 0 : i32
    %c0_i32_1 = arith.constant 0 : i32
    return %c0_i32, %c0_i32_0 : i32, i32
  }
  func.func @transform_4(%arg0: i32, %arg1: i32) -> (i32, i32, i32) {
    %c0_i32 = arith.constant 0 : i32
    %c0_i32_0 = arith.constant 0 : i32
    return %arg1, %arg0, %c0_i32 : i32, i32, i32
  }
  func.func @transform_5(%arg0: i32, %arg1: i32) -> (i32, i32) {
    %c0_i32 = arith.constant 0 : i32
    %c0_i32_0 = arith.constant 0 : i32
    return %arg0, %c0_i32 : i32, i32
  }
}

module attributes {stable_mosaic.version = 11 : i64} {
  func.func @_gru_chunk_kernel(%arg0: i32, %arg1: i32, %arg2: memref<8x8x384xf32, #tpu.memory_space<vmem>>, %arg3: memref<8x1xi32, #tpu.memory_space<vmem>>, %arg4: memref<128x384xbf16, #tpu.memory_space<vmem>>, %arg5: memref<1x384xf32, #tpu.memory_space<vmem>>, %arg6: memref<8x8x128xf32, #tpu.memory_space<vmem>>, %arg7: memref<8x128xf32, #tpu.memory_space<vmem>>, %arg8: memref<8x128xf32, #tpu.memory_space<vmem>>) attributes {dimension_semantics = [#tpu.dimension_semantics<parallel>, #tpu.dimension_semantics<arbitrary>], iteration_bounds = array<i64: 1, 1>, scalar_prefetch = 0 : i64, scratch_operands = 1 : i64, tpu.core_type = #tpu.core_type<tc>, window_params = [{transform_indices = @transform_0, window_bounds = array<i64: 8, 8, 384>}, {transform_indices = @transform_1, window_bounds = array<i64: 8, 1>}, {pipeline_mode = #tpu.pipeline_mode<synchronous>, transform_indices = @transform_2, window_bounds = array<i64: 128, 384>}, {pipeline_mode = #tpu.pipeline_mode<synchronous>, transform_indices = @transform_3, window_bounds = array<i64: 1, 384>}, {transform_indices = @transform_4, window_bounds = array<i64: 8, 8, 128>}, {transform_indices = @transform_5, window_bounds = array<i64: 8, 128>}]} {
    %c0_i32 = arith.constant 0 : i32
    %0 = arith.cmpi eq, %arg1, %c0_i32 : i32
    %1 = arith.extui %0 : i1 to i32
    %c0_i32_0 = arith.constant 0 : i32
    %2 = arith.cmpi ne, %1, %c0_i32_0 : i32
    scf.if %2 {
      %cst_85 = arith.constant 0.000000e+00 : f32
      %388 = vector.broadcast %cst_85 : f32 to vector<8x128xf32>
      %c0_86 = arith.constant 0 : index
      %c0_87 = arith.constant 0 : index
      %389 = vector.load %arg8[%c0_86, %c0_87] : memref<8x128xf32, #tpu.memory_space<vmem>>, vector<8x128xf32>
      tpu.vector_store %arg8[%c0_86, %c0_87], %388 {strides = array<i32>} : memref<8x128xf32, #tpu.memory_space<vmem>>, vector<8x128xf32>,
    } else {
    }
    %c0 = arith.constant 0 : index
    %c0_1 = arith.constant 0 : index
    %3 = vector.load %arg4[%c0, %c0_1] : memref<128x384xbf16, #tpu.memory_space<vmem>>, vector<128x384xbf16>
    %c0_2 = arith.constant 0 : index
    %c0_3 = arith.constant 0 : index
    %4 = vector.load %arg5[%c0_2, %c0_3] : memref<1x384xf32, #tpu.memory_space<vmem>>, vector<1x384xf32>
    %c0_4 = arith.constant 0 : index
    %c0_5 = arith.constant 0 : index
    %5 = vector.load %arg3[%c0_4, %c0_5] : memref<8x1xi32, #tpu.memory_space<vmem>>, vector<8x1xi32>
    %c8_i32 = arith.constant 8 : i32
    %6 = arith.muli %arg1, %c8_i32 : i32
    %c0_6 = arith.constant 0 : index
    %c0_7 = arith.constant 0 : index
    %7 = vector.load %arg8[%c0_6, %c0_7] : memref<8x128xf32, #tpu.memory_space<vmem>>, vector<8x128xf32>
    %c0_i32_8 = arith.constant 0 : i32
    %8 = arith.index_cast %c0_i32_8 : i32 to index
    %c0_9 = arith.constant 0 : index
    %c0_10 = arith.constant 0 : index
    %9 = vector.load %arg2[%8, %c0_9, %c0_10] : memref<8x8x384xf32, #tpu.memory_space<vmem>>, vector<1x8x384xf32>
    %10 = vector.shape_cast %9 : vector<1x8x384xf32> to vector<8x384xf32>
    %11 = arith.truncf %7 : vector<8x128xf32> to vector<8x128xbf16>
    %cst = arith.constant dense<0.000000e+00> : vector<8x384xf32>
    %12 = tpu.matmul %11, %3, %cst {dimension_numbers = #tpu.dot_dimension_numbers<[1], [0], [0], [1], [0, 0, 1, 1], [], []>} : vector<8x128xbf16>, vector<128x384xbf16>, vector<8x384xf32> -> vector<8x384xf32>
    %13 = vector.broadcast %4 : vector<1x384xf32> to vector<8x384xf32>
    %14 = arith.addf %12, %13 : vector<8x384xf32>
    %15 = vector.extract_strided_slice %10 {offsets = [0, 0], sizes = [8, 128], strides = [1, 1]} : vector<8x384xf32> to vector<8x128xf32>
    %16 = vector.extract_strided_slice %14 {offsets = [0, 0], sizes = [8, 128], strides = [1, 1]} : vector<8x384xf32> to vector<8x128xf32>
    %17 = arith.addf %15, %16 : vector<8x128xf32>
    %18 = arith.negf %17 : vector<8x128xf32>
    %19 = math.exp %18 : vector<8x128xf32>
    %cst_11 = arith.constant 1.000000e+00 : f32
    %20 = vector.broadcast %cst_11 : f32 to vector<8x128xf32>
    %21 = arith.addf %20, %19 : vector<8x128xf32>
    %22 = arith.divf %20, %21 : vector<8x128xf32>
    %23 = vector.extract_strided_slice %10 {offsets = [0, 128], sizes = [8, 128], strides = [1, 1]} : vector<8x384xf32> to vector<8x128xf32>
    %24 = vector.extract_strided_slice %14 {offsets = [0, 128], sizes = [8, 128], strides = [1, 1]} : vector<8x384xf32> to vector<8x128xf32>
    %25 = arith.addf %23, %24 : vector<8x128xf32>
    %26 = arith.negf %25 : vector<8x128xf32>
    %27 = math.exp %26 : vector<8x128xf32>
    %cst_12 = arith.constant 1.000000e+00 : f32
    %28 = vector.broadcast %cst_12 : f32 to vector<8x128xf32>
    %29 = arith.addf %28, %27 : vector<8x128xf32>
    %30 = arith.divf %28, %29 : vector<8x128xf32>
    %31 = vector.extract_strided_slice %10 {offsets = [0, 256], sizes = [8, 128], strides = [1, 1]} : vector<8x384xf32> to vector<8x128xf32>
    %32 = vector.extract_strided_slice %14 {offsets = [0, 256], sizes = [8, 128], strides = [1, 1]} : vector<8x384xf32> to vector<8x128xf32>
    %33 = arith.mulf %22, %32 : vector<8x128xf32>
    %34 = arith.addf %31, %33 : vector<8x128xf32>
    %35 = math.tanh %34 : vector<8x128xf32>
    %cst_13 = arith.constant 1.000000e+00 : f32
    %36 = vector.broadcast %cst_13 : f32 to vector<8x128xf32>
    %37 = arith.subf %36, %30 : vector<8x128xf32>
    %38 = arith.mulf %37, %35 : vector<8x128xf32>
    %39 = arith.mulf %30, %7 : vector<8x128xf32>
    %40 = arith.addf %38, %39 : vector<8x128xf32>
    %41 = arith.addi %6, %c0_i32_8 : i32
    %42 = vector.broadcast %41 : i32 to vector<8x1xi32>
    %43 = arith.cmpi sgt, %5, %42 : vector<8x1xi32>
    %cst_14 = arith.constant 0.000000e+00 : f32
    %44 = vector.shape_cast %43 : vector<8x1xi1> to vector<8x1xi1>
    %45 = vector.broadcast %44 : vector<8x1xi1> to vector<8x128xi1>
    %46 = vector.broadcast %cst_14 : f32 to vector<8x128xf32>
    %47 = arith.select %45, %40, %46 : vector<8x128xi1>, vector<8x128xf32>
    %48 = arith.index_cast %c0_i32_8 : i32 to index
    %c0_15 = arith.constant 0 : index
    %c0_16 = arith.constant 0 : index
    %49 = vector.load %arg6[%48, %c0_15, %c0_16] : memref<8x8x128xf32, #tpu.memory_space<vmem>>, vector<1x8x128xf32>
    %50 = vector.shape_cast %49 : vector<1x8x128xf32> to vector<8x128xf32>
    %51 = vector.shape_cast %47 : vector<8x128xf32> to vector<1x8x128xf32>
    tpu.vector_store %arg6[%48, %c0_15, %c0_16], %51 {strides = array<i32>} : memref<8x8x128xf32, #tpu.memory_space<vmem>>, vector<1x8x128xf32>,
    %52 = vector.shape_cast %43 : vector<8x1xi1> to vector<8x1xi1>
    %53 = vector.broadcast %52 : vector<8x1xi1> to vector<8x128xi1>
    %54 = arith.select %53, %40, %7 : vector<8x128xi1>, vector<8x128xf32>
    %c1_i32 = arith.constant 1 : i32
    %55 = arith.index_cast %c1_i32 : i32 to index
    %c0_17 = arith.constant 0 : index
    %c0_18 = arith.constant 0 : index
    %56 = vector.load %arg2[%55, %c0_17, %c0_18] : memref<8x8x384xf32, #tpu.memory_space<vmem>>, vector<1x8x384xf32>
    %57 = vector.shape_cast %56 : vector<1x8x384xf32> to vector<8x384xf32>
    %58 = arith.truncf %54 : vector<8x128xf32> to vector<8x128xbf16>
    %cst_19 = arith.constant dense<0.000000e+00> : vector<8x384xf32>
    %59 = tpu.matmul %58, %3, %cst_19 {dimension_numbers = #tpu.dot_dimension_numbers<[1], [0], [0], [1], [0, 0, 1, 1], [], []>} : vector<8x128xbf16>, vector<128x384xbf16>, vector<8x384xf32> -> vector<8x384xf32>
    %60 = vector.broadcast %4 : vector<1x384xf32> to vector<8x384xf32>
    %61 = arith.addf %59, %60 : vector<8x384xf32>
    %62 = vector.extract_strided_slice %57 {offsets = [0, 0], sizes = [8, 128], strides = [1, 1]} : vector<8x384xf32> to vector<8x128xf32>
    %63 = vector.extract_strided_slice %61 {offsets = [0, 0], sizes = [8, 128], strides = [1, 1]} : vector<8x384xf32> to vector<8x128xf32>
    %64 = arith.addf %62, %63 : vector<8x128xf32>
    %65 = arith.negf %64 : vector<8x128xf32>
    %66 = math.exp %65 : vector<8x128xf32>
    %cst_20 = arith.constant 1.000000e+00 : f32
    %67 = vector.broadcast %cst_20 : f32 to vector<8x128xf32>
    %68 = arith.addf %67, %66 : vector<8x128xf32>
    %69 = arith.divf %67, %68 : vector<8x128xf32>
    %70 = vector.extract_strided_slice %57 {offsets = [0, 128], sizes = [8, 128], strides = [1, 1]} : vector<8x384xf32> to vector<8x128xf32>
    %71 = vector.extract_strided_slice %61 {offsets = [0, 128], sizes = [8, 128], strides = [1, 1]} : vector<8x384xf32> to vector<8x128xf32>
    %72 = arith.addf %70, %71 : vector<8x128xf32>
    %73 = arith.negf %72 : vector<8x128xf32>
    %74 = math.exp %73 : vector<8x128xf32>
    %cst_21 = arith.constant 1.000000e+00 : f32
    %75 = vector.broadcast %cst_21 : f32 to vector<8x128xf32>
    %76 = arith.addf %75, %74 : vector<8x128xf32>
    %77 = arith.divf %75, %76 : vector<8x128xf32>
    %78 = vector.extract_strided_slice %57 {offsets = [0, 256], sizes = [8, 128], strides = [1, 1]} : vector<8x384xf32> to vector<8x128xf32>
    %79 = vector.extract_strided_slice %61 {offsets = [0, 256], sizes = [8, 128], strides = [1, 1]} : vector<8x384xf32> to vector<8x128xf32>
    %80 = arith.mulf %69, %79 : vector<8x128xf32>
    %81 = arith.addf %78, %80 : vector<8x128xf32>
    %82 = math.tanh %81 : vector<8x128xf32>
    %cst_22 = arith.constant 1.000000e+00 : f32
    %83 = vector.broadcast %cst_22 : f32 to vector<8x128xf32>
    %84 = arith.subf %83, %77 : vector<8x128xf32>
    %85 = arith.mulf %84, %82 : vector<8x128xf32>
    %86 = arith.mulf %77, %54 : vector<8x128xf32>
    %87 = arith.addf %85, %86 : vector<8x128xf32>
    %88 = arith.addi %6, %c1_i32 : i32
    %89 = vector.broadcast %88 : i32 to vector<8x1xi32>
    %90 = arith.cmpi sgt, %5, %89 : vector<8x1xi32>
    %cst_23 = arith.constant 0.000000e+00 : f32
    %91 = vector.shape_cast %90 : vector<8x1xi1> to vector<8x1xi1>
    %92 = vector.broadcast %91 : vector<8x1xi1> to vector<8x128xi1>
    %93 = vector.broadcast %cst_23 : f32 to vector<8x128xf32>
    %94 = arith.select %92, %87, %93 : vector<8x128xi1>, vector<8x128xf32>
    %95 = arith.index_cast %c1_i32 : i32 to index
    %c0_24 = arith.constant 0 : index
    %c0_25 = arith.constant 0 : index
    %96 = vector.load %arg6[%95, %c0_24, %c0_25] : memref<8x8x128xf32, #tpu.memory_space<vmem>>, vector<1x8x128xf32>
    %97 = vector.shape_cast %96 : vector<1x8x128xf32> to vector<8x128xf32>
    %98 = vector.shape_cast %94 : vector<8x128xf32> to vector<1x8x128xf32>
    tpu.vector_store %arg6[%95, %c0_24, %c0_25], %98 {strides = array<i32>} : memref<8x8x128xf32, #tpu.memory_space<vmem>>, vector<1x8x128xf32>,
    %99 = vector.shape_cast %90 : vector<8x1xi1> to vector<8x1xi1>
    %100 = vector.broadcast %99 : vector<8x1xi1> to vector<8x128xi1>
    %101 = arith.select %100, %87, %54 : vector<8x128xi1>, vector<8x128xf32>
    %c2_i32 = arith.constant 2 : i32
    %102 = arith.index_cast %c2_i32 : i32 to index
    %c0_26 = arith.constant 0 : index
    %c0_27 = arith.constant 0 : index
    %103 = vector.load %arg2[%102, %c0_26, %c0_27] : memref<8x8x384xf32, #tpu.memory_space<vmem>>, vector<1x8x384xf32>
    %104 = vector.shape_cast %103 : vector<1x8x384xf32> to vector<8x384xf32>
    %105 = arith.truncf %101 : vector<8x128xf32> to vector<8x128xbf16>
    %cst_28 = arith.constant dense<0.000000e+00> : vector<8x384xf32>
    %106 = tpu.matmul %105, %3, %cst_28 {dimension_numbers = #tpu.dot_dimension_numbers<[1], [0], [0], [1], [0, 0, 1, 1], [], []>} : vector<8x128xbf16>, vector<128x384xbf16>, vector<8x384xf32> -> vector<8x384xf32>
    %107 = vector.broadcast %4 : vector<1x384xf32> to vector<8x384xf32>
    %108 = arith.addf %106, %107 : vector<8x384xf32>
    %109 = vector.extract_strided_slice %104 {offsets = [0, 0], sizes = [8, 128], strides = [1, 1]} : vector<8x384xf32> to vector<8x128xf32>
    %110 = vector.extract_strided_slice %108 {offsets = [0, 0], sizes = [8, 128], strides = [1, 1]} : vector<8x384xf32> to vector<8x128xf32>
    %111 = arith.addf %109, %110 : vector<8x128xf32>
    %112 = arith.negf %111 : vector<8x128xf32>
    %113 = math.exp %112 : vector<8x128xf32>
    %cst_29 = arith.constant 1.000000e+00 : f32
    %114 = vector.broadcast %cst_29 : f32 to vector<8x128xf32>
    %115 = arith.addf %114, %113 : vector<8x128xf32>
    %116 = arith.divf %114, %115 : vector<8x128xf32>
    %117 = vector.extract_strided_slice %104 {offsets = [0, 128], sizes = [8, 128], strides = [1, 1]} : vector<8x384xf32> to vector<8x128xf32>
    %118 = vector.extract_strided_slice %108 {offsets = [0, 128], sizes = [8, 128], strides = [1, 1]} : vector<8x384xf32> to vector<8x128xf32>
    %119 = arith.addf %117, %118 : vector<8x128xf32>
    %120 = arith.negf %119 : vector<8x128xf32>
    %121 = math.exp %120 : vector<8x128xf32>
    %cst_30 = arith.constant 1.000000e+00 : f32
    %122 = vector.broadcast %cst_30 : f32 to vector<8x128xf32>
    %123 = arith.addf %122, %121 : vector<8x128xf32>
    %124 = arith.divf %122, %123 : vector<8x128xf32>
    %125 = vector.extract_strided_slice %104 {offsets = [0, 256], sizes = [8, 128], strides = [1, 1]} : vector<8x384xf32> to vector<8x128xf32>
    %126 = vector.extract_strided_slice %108 {offsets = [0, 256], sizes = [8, 128], strides = [1, 1]} : vector<8x384xf32> to vector<8x128xf32>
    %127 = arith.mulf %116, %126 : vector<8x128xf32>
    %128 = arith.addf %125, %127 : vector<8x128xf32>
    %129 = math.tanh %128 : vector<8x128xf32>
    %cst_31 = arith.constant 1.000000e+00 : f32
    %130 = vector.broadcast %cst_31 : f32 to vector<8x128xf32>
    %131 = arith.subf %130, %124 : vector<8x128xf32>
    %132 = arith.mulf %131, %129 : vector<8x128xf32>
    %133 = arith.mulf %124, %101 : vector<8x128xf32>
    %134 = arith.addf %132, %133 : vector<8x128xf32>
    %135 = arith.addi %6, %c2_i32 : i32
    %136 = vector.broadcast %135 : i32 to vector<8x1xi32>
    %137 = arith.cmpi sgt, %5, %136 : vector<8x1xi32>
    %cst_32 = arith.constant 0.000000e+00 : f32
    %138 = vector.shape_cast %137 : vector<8x1xi1> to vector<8x1xi1>
    %139 = vector.broadcast %138 : vector<8x1xi1> to vector<8x128xi1>
    %140 = vector.broadcast %cst_32 : f32 to vector<8x128xf32>
    %141 = arith.select %139, %134, %140 : vector<8x128xi1>, vector<8x128xf32>
    %142 = arith.index_cast %c2_i32 : i32 to index
    %c0_33 = arith.constant 0 : index
    %c0_34 = arith.constant 0 : index
    %143 = vector.load %arg6[%142, %c0_33, %c0_34] : memref<8x8x128xf32, #tpu.memory_space<vmem>>, vector<1x8x128xf32>
    %144 = vector.shape_cast %143 : vector<1x8x128xf32> to vector<8x128xf32>
    %145 = vector.shape_cast %141 : vector<8x128xf32> to vector<1x8x128xf32>
    tpu.vector_store %arg6[%142, %c0_33, %c0_34], %145 {strides = array<i32>} : memref<8x8x128xf32, #tpu.memory_space<vmem>>, vector<1x8x128xf32>,
    %146 = vector.shape_cast %137 : vector<8x1xi1> to vector<8x1xi1>
    %147 = vector.broadcast %146 : vector<8x1xi1> to vector<8x128xi1>
    %148 = arith.select %147, %134, %101 : vector<8x128xi1>, vector<8x128xf32>
    %c3_i32 = arith.constant 3 : i32
    %149 = arith.index_cast %c3_i32 : i32 to index
    %c0_35 = arith.constant 0 : index
    %c0_36 = arith.constant 0 : index
    %150 = vector.load %arg2[%149, %c0_35, %c0_36] : memref<8x8x384xf32, #tpu.memory_space<vmem>>, vector<1x8x384xf32>
    %151 = vector.shape_cast %150 : vector<1x8x384xf32> to vector<8x384xf32>
    %152 = arith.truncf %148 : vector<8x128xf32> to vector<8x128xbf16>
    %cst_37 = arith.constant dense<0.000000e+00> : vector<8x384xf32>
    %153 = tpu.matmul %152, %3, %cst_37 {dimension_numbers = #tpu.dot_dimension_numbers<[1], [0], [0], [1], [0, 0, 1, 1], [], []>} : vector<8x128xbf16>, vector<128x384xbf16>, vector<8x384xf32> -> vector<8x384xf32>
    %154 = vector.broadcast %4 : vector<1x384xf32> to vector<8x384xf32>
    %155 = arith.addf %153, %154 : vector<8x384xf32>
    %156 = vector.extract_strided_slice %151 {offsets = [0, 0], sizes = [8, 128], strides = [1, 1]} : vector<8x384xf32> to vector<8x128xf32>
    %157 = vector.extract_strided_slice %155 {offsets = [0, 0], sizes = [8, 128], strides = [1, 1]} : vector<8x384xf32> to vector<8x128xf32>
    %158 = arith.addf %156, %157 : vector<8x128xf32>
    %159 = arith.negf %158 : vector<8x128xf32>
    %160 = math.exp %159 : vector<8x128xf32>
    %cst_38 = arith.constant 1.000000e+00 : f32
    %161 = vector.broadcast %cst_38 : f32 to vector<8x128xf32>
    %162 = arith.addf %161, %160 : vector<8x128xf32>
    %163 = arith.divf %161, %162 : vector<8x128xf32>
    %164 = vector.extract_strided_slice %151 {offsets = [0, 128], sizes = [8, 128], strides = [1, 1]} : vector<8x384xf32> to vector<8x128xf32>
    %165 = vector.extract_strided_slice %155 {offsets = [0, 128], sizes = [8, 128], strides = [1, 1]} : vector<8x384xf32> to vector<8x128xf32>
    %166 = arith.addf %164, %165 : vector<8x128xf32>
    %167 = arith.negf %166 : vector<8x128xf32>
    %168 = math.exp %167 : vector<8x128xf32>
    %cst_39 = arith.constant 1.000000e+00 : f32
    %169 = vector.broadcast %cst_39 : f32 to vector<8x128xf32>
    %170 = arith.addf %169, %168 : vector<8x128xf32>
    %171 = arith.divf %169, %170 : vector<8x128xf32>
    %172 = vector.extract_strided_slice %151 {offsets = [0, 256], sizes = [8, 128], strides = [1, 1]} : vector<8x384xf32> to vector<8x128xf32>
    %173 = vector.extract_strided_slice %155 {offsets = [0, 256], sizes = [8, 128], strides = [1, 1]} : vector<8x384xf32> to vector<8x128xf32>
    %174 = arith.mulf %163, %173 : vector<8x128xf32>
    %175 = arith.addf %172, %174 : vector<8x128xf32>
    %176 = math.tanh %175 : vector<8x128xf32>
    %cst_40 = arith.constant 1.000000e+00 : f32
    %177 = vector.broadcast %cst_40 : f32 to vector<8x128xf32>
    %178 = arith.subf %177, %171 : vector<8x128xf32>
    %179 = arith.mulf %178, %176 : vector<8x128xf32>
    %180 = arith.mulf %171, %148 : vector<8x128xf32>
    %181 = arith.addf %179, %180 : vector<8x128xf32>
    %182 = arith.addi %6, %c3_i32 : i32
    %183 = vector.broadcast %182 : i32 to vector<8x1xi32>
    %184 = arith.cmpi sgt, %5, %183 : vector<8x1xi32>
    %cst_41 = arith.constant 0.000000e+00 : f32
    %185 = vector.shape_cast %184 : vector<8x1xi1> to vector<8x1xi1>
    %186 = vector.broadcast %185 : vector<8x1xi1> to vector<8x128xi1>
    %187 = vector.broadcast %cst_41 : f32 to vector<8x128xf32>
    %188 = arith.select %186, %181, %187 : vector<8x128xi1>, vector<8x128xf32>
    %189 = arith.index_cast %c3_i32 : i32 to index
    %c0_42 = arith.constant 0 : index
    %c0_43 = arith.constant 0 : index
    %190 = vector.load %arg6[%189, %c0_42, %c0_43] : memref<8x8x128xf32, #tpu.memory_space<vmem>>, vector<1x8x128xf32>
    %191 = vector.shape_cast %190 : vector<1x8x128xf32> to vector<8x128xf32>
    %192 = vector.shape_cast %188 : vector<8x128xf32> to vector<1x8x128xf32>
    tpu.vector_store %arg6[%189, %c0_42, %c0_43], %192 {strides = array<i32>} : memref<8x8x128xf32, #tpu.memory_space<vmem>>, vector<1x8x128xf32>,
    %193 = vector.shape_cast %184 : vector<8x1xi1> to vector<8x1xi1>
    %194 = vector.broadcast %193 : vector<8x1xi1> to vector<8x128xi1>
    %195 = arith.select %194, %181, %148 : vector<8x128xi1>, vector<8x128xf32>
    %c4_i32 = arith.constant 4 : i32
    %196 = arith.index_cast %c4_i32 : i32 to index
    %c0_44 = arith.constant 0 : index
    %c0_45 = arith.constant 0 : index
    %197 = vector.load %arg2[%196, %c0_44, %c0_45] : memref<8x8x384xf32, #tpu.memory_space<vmem>>, vector<1x8x384xf32>
    %198 = vector.shape_cast %197 : vector<1x8x384xf32> to vector<8x384xf32>
    %199 = arith.truncf %195 : vector<8x128xf32> to vector<8x128xbf16>
    %cst_46 = arith.constant dense<0.000000e+00> : vector<8x384xf32>
    %200 = tpu.matmul %199, %3, %cst_46 {dimension_numbers = #tpu.dot_dimension_numbers<[1], [0], [0], [1], [0, 0, 1, 1], [], []>} : vector<8x128xbf16>, vector<128x384xbf16>, vector<8x384xf32> -> vector<8x384xf32>
    %201 = vector.broadcast %4 : vector<1x384xf32> to vector<8x384xf32>
    %202 = arith.addf %200, %201 : vector<8x384xf32>
    %203 = vector.extract_strided_slice %198 {offsets = [0, 0], sizes = [8, 128], strides = [1, 1]} : vector<8x384xf32> to vector<8x128xf32>
    %204 = vector.extract_strided_slice %202 {offsets = [0, 0], sizes = [8, 128], strides = [1, 1]} : vector<8x384xf32> to vector<8x128xf32>
    %205 = arith.addf %203, %204 : vector<8x128xf32>
    %206 = arith.negf %205 : vector<8x128xf32>
    %207 = math.exp %206 : vector<8x128xf32>
    %cst_47 = arith.constant 1.000000e+00 : f32
    %208 = vector.broadcast %cst_47 : f32 to vector<8x128xf32>
    %209 = arith.addf %208, %207 : vector<8x128xf32>
    %210 = arith.divf %208, %209 : vector<8x128xf32>
    %211 = vector.extract_strided_slice %198 {offsets = [0, 128], sizes = [8, 128], strides = [1, 1]} : vector<8x384xf32> to vector<8x128xf32>
    %212 = vector.extract_strided_slice %202 {offsets = [0, 128], sizes = [8, 128], strides = [1, 1]} : vector<8x384xf32> to vector<8x128xf32>
    %213 = arith.addf %211, %212 : vector<8x128xf32>
    %214 = arith.negf %213 : vector<8x128xf32>
    %215 = math.exp %214 : vector<8x128xf32>
    %cst_48 = arith.constant 1.000000e+00 : f32
    %216 = vector.broadcast %cst_48 : f32 to vector<8x128xf32>
    %217 = arith.addf %216, %215 : vector<8x128xf32>
    %218 = arith.divf %216, %217 : vector<8x128xf32>
    %219 = vector.extract_strided_slice %198 {offsets = [0, 256], sizes = [8, 128], strides = [1, 1]} : vector<8x384xf32> to vector<8x128xf32>
    %220 = vector.extract_strided_slice %202 {offsets = [0, 256], sizes = [8, 128], strides = [1, 1]} : vector<8x384xf32> to vector<8x128xf32>
    %221 = arith.mulf %210, %220 : vector<8x128xf32>
    %222 = arith.addf %219, %221 : vector<8x128xf32>
    %223 = math.tanh %222 : vector<8x128xf32>
    %cst_49 = arith.constant 1.000000e+00 : f32
    %224 = vector.broadcast %cst_49 : f32 to vector<8x128xf32>
    %225 = arith.subf %224, %218 : vector<8x128xf32>
    %226 = arith.mulf %225, %223 : vector<8x128xf32>
    %227 = arith.mulf %218, %195 : vector<8x128xf32>
    %228 = arith.addf %226, %227 : vector<8x128xf32>
    %229 = arith.addi %6, %c4_i32 : i32
    %230 = vector.broadcast %229 : i32 to vector<8x1xi32>
    %231 = arith.cmpi sgt, %5, %230 : vector<8x1xi32>
    %cst_50 = arith.constant 0.000000e+00 : f32
    %232 = vector.shape_cast %231 : vector<8x1xi1> to vector<8x1xi1>
    %233 = vector.broadcast %232 : vector<8x1xi1> to vector<8x128xi1>
    %234 = vector.broadcast %cst_50 : f32 to vector<8x128xf32>
    %235 = arith.select %233, %228, %234 : vector<8x128xi1>, vector<8x128xf32>
    %236 = arith.index_cast %c4_i32 : i32 to index
    %c0_51 = arith.constant 0 : index
    %c0_52 = arith.constant 0 : index
    %237 = vector.load %arg6[%236, %c0_51, %c0_52] : memref<8x8x128xf32, #tpu.memory_space<vmem>>, vector<1x8x128xf32>
    %238 = vector.shape_cast %237 : vector<1x8x128xf32> to vector<8x128xf32>
    %239 = vector.shape_cast %235 : vector<8x128xf32> to vector<1x8x128xf32>
    tpu.vector_store %arg6[%236, %c0_51, %c0_52], %239 {strides = array<i32>} : memref<8x8x128xf32, #tpu.memory_space<vmem>>, vector<1x8x128xf32>,
    %240 = vector.shape_cast %231 : vector<8x1xi1> to vector<8x1xi1>
    %241 = vector.broadcast %240 : vector<8x1xi1> to vector<8x128xi1>
    %242 = arith.select %241, %228, %195 : vector<8x128xi1>, vector<8x128xf32>
    %c5_i32 = arith.constant 5 : i32
    %243 = arith.index_cast %c5_i32 : i32 to index
    %c0_53 = arith.constant 0 : index
    %c0_54 = arith.constant 0 : index
    %244 = vector.load %arg2[%243, %c0_53, %c0_54] : memref<8x8x384xf32, #tpu.memory_space<vmem>>, vector<1x8x384xf32>
    %245 = vector.shape_cast %244 : vector<1x8x384xf32> to vector<8x384xf32>
    %246 = arith.truncf %242 : vector<8x128xf32> to vector<8x128xbf16>
    %cst_55 = arith.constant dense<0.000000e+00> : vector<8x384xf32>
    %247 = tpu.matmul %246, %3, %cst_55 {dimension_numbers = #tpu.dot_dimension_numbers<[1], [0], [0], [1], [0, 0, 1, 1], [], []>} : vector<8x128xbf16>, vector<128x384xbf16>, vector<8x384xf32> -> vector<8x384xf32>
    %248 = vector.broadcast %4 : vector<1x384xf32> to vector<8x384xf32>
    %249 = arith.addf %247, %248 : vector<8x384xf32>
    %250 = vector.extract_strided_slice %245 {offsets = [0, 0], sizes = [8, 128], strides = [1, 1]} : vector<8x384xf32> to vector<8x128xf32>
    %251 = vector.extract_strided_slice %249 {offsets = [0, 0], sizes = [8, 128], strides = [1, 1]} : vector<8x384xf32> to vector<8x128xf32>
    %252 = arith.addf %250, %251 : vector<8x128xf32>
    %253 = arith.negf %252 : vector<8x128xf32>
    %254 = math.exp %253 : vector<8x128xf32>
    %cst_56 = arith.constant 1.000000e+00 : f32
    %255 = vector.broadcast %cst_56 : f32 to vector<8x128xf32>
    %256 = arith.addf %255, %254 : vector<8x128xf32>
    %257 = arith.divf %255, %256 : vector<8x128xf32>
    %258 = vector.extract_strided_slice %245 {offsets = [0, 128], sizes = [8, 128], strides = [1, 1]} : vector<8x384xf32> to vector<8x128xf32>
    %259 = vector.extract_strided_slice %249 {offsets = [0, 128], sizes = [8, 128], strides = [1, 1]} : vector<8x384xf32> to vector<8x128xf32>
    %260 = arith.addf %258, %259 : vector<8x128xf32>
    %261 = arith.negf %260 : vector<8x128xf32>
    %262 = math.exp %261 : vector<8x128xf32>
    %cst_57 = arith.constant 1.000000e+00 : f32
    %263 = vector.broadcast %cst_57 : f32 to vector<8x128xf32>
    %264 = arith.addf %263, %262 : vector<8x128xf32>
    %265 = arith.divf %263, %264 : vector<8x128xf32>
    %266 = vector.extract_strided_slice %245 {offsets = [0, 256], sizes = [8, 128], strides = [1, 1]} : vector<8x384xf32> to vector<8x128xf32>
    %267 = vector.extract_strided_slice %249 {offsets = [0, 256], sizes = [8, 128], strides = [1, 1]} : vector<8x384xf32> to vector<8x128xf32>
    %268 = arith.mulf %257, %267 : vector<8x128xf32>
    %269 = arith.addf %266, %268 : vector<8x128xf32>
    %270 = math.tanh %269 : vector<8x128xf32>
    %cst_58 = arith.constant 1.000000e+00 : f32
    %271 = vector.broadcast %cst_58 : f32 to vector<8x128xf32>
    %272 = arith.subf %271, %265 : vector<8x128xf32>
    %273 = arith.mulf %272, %270 : vector<8x128xf32>
    %274 = arith.mulf %265, %242 : vector<8x128xf32>
    %275 = arith.addf %273, %274 : vector<8x128xf32>
    %276 = arith.addi %6, %c5_i32 : i32
    %277 = vector.broadcast %276 : i32 to vector<8x1xi32>
    %278 = arith.cmpi sgt, %5, %277 : vector<8x1xi32>
    %cst_59 = arith.constant 0.000000e+00 : f32
    %279 = vector.shape_cast %278 : vector<8x1xi1> to vector<8x1xi1>
    %280 = vector.broadcast %279 : vector<8x1xi1> to vector<8x128xi1>
    %281 = vector.broadcast %cst_59 : f32 to vector<8x128xf32>
    %282 = arith.select %280, %275, %281 : vector<8x128xi1>, vector<8x128xf32>
    %283 = arith.index_cast %c5_i32 : i32 to index
    %c0_60 = arith.constant 0 : index
    %c0_61 = arith.constant 0 : index
    %284 = vector.load %arg6[%283, %c0_60, %c0_61] : memref<8x8x128xf32, #tpu.memory_space<vmem>>, vector<1x8x128xf32>
    %285 = vector.shape_cast %284 : vector<1x8x128xf32> to vector<8x128xf32>
    %286 = vector.shape_cast %282 : vector<8x128xf32> to vector<1x8x128xf32>
    tpu.vector_store %arg6[%283, %c0_60, %c0_61], %286 {strides = array<i32>} : memref<8x8x128xf32, #tpu.memory_space<vmem>>, vector<1x8x128xf32>,
    %287 = vector.shape_cast %278 : vector<8x1xi1> to vector<8x1xi1>
    %288 = vector.broadcast %287 : vector<8x1xi1> to vector<8x128xi1>
    %289 = arith.select %288, %275, %242 : vector<8x128xi1>, vector<8x128xf32>
    %c6_i32 = arith.constant 6 : i32
    %290 = arith.index_cast %c6_i32 : i32 to index
    %c0_62 = arith.constant 0 : index
    %c0_63 = arith.constant 0 : index
    %291 = vector.load %arg2[%290, %c0_62, %c0_63] : memref<8x8x384xf32, #tpu.memory_space<vmem>>, vector<1x8x384xf32>
    %292 = vector.shape_cast %291 : vector<1x8x384xf32> to vector<8x384xf32>
    %293 = arith.truncf %289 : vector<8x128xf32> to vector<8x128xbf16>
    %cst_64 = arith.constant dense<0.000000e+00> : vector<8x384xf32>
    %294 = tpu.matmul %293, %3, %cst_64 {dimension_numbers = #tpu.dot_dimension_numbers<[1], [0], [0], [1], [0, 0, 1, 1], [], []>} : vector<8x128xbf16>, vector<128x384xbf16>, vector<8x384xf32> -> vector<8x384xf32>
    %295 = vector.broadcast %4 : vector<1x384xf32> to vector<8x384xf32>
    %296 = arith.addf %294, %295 : vector<8x384xf32>
    %297 = vector.extract_strided_slice %292 {offsets = [0, 0], sizes = [8, 128], strides = [1, 1]} : vector<8x384xf32> to vector<8x128xf32>
    %298 = vector.extract_strided_slice %296 {offsets = [0, 0], sizes = [8, 128], strides = [1, 1]} : vector<8x384xf32> to vector<8x128xf32>
    %299 = arith.addf %297, %298 : vector<8x128xf32>
    %300 = arith.negf %299 : vector<8x128xf32>
    %301 = math.exp %300 : vector<8x128xf32>
    %cst_65 = arith.constant 1.000000e+00 : f32
    %302 = vector.broadcast %cst_65 : f32 to vector<8x128xf32>
    %303 = arith.addf %302, %301 : vector<8x128xf32>
    %304 = arith.divf %302, %303 : vector<8x128xf32>
    %305 = vector.extract_strided_slice %292 {offsets = [0, 128], sizes = [8, 128], strides = [1, 1]} : vector<8x384xf32> to vector<8x128xf32>
    %306 = vector.extract_strided_slice %296 {offsets = [0, 128], sizes = [8, 128], strides = [1, 1]} : vector<8x384xf32> to vector<8x128xf32>
    %307 = arith.addf %305, %306 : vector<8x128xf32>
    %308 = arith.negf %307 : vector<8x128xf32>
    %309 = math.exp %308 : vector<8x128xf32>
    %cst_66 = arith.constant 1.000000e+00 : f32
    %310 = vector.broadcast %cst_66 : f32 to vector<8x128xf32>
    %311 = arith.addf %310, %309 : vector<8x128xf32>
    %312 = arith.divf %310, %311 : vector<8x128xf32>
    %313 = vector.extract_strided_slice %292 {offsets = [0, 256], sizes = [8, 128], strides = [1, 1]} : vector<8x384xf32> to vector<8x128xf32>
    %314 = vector.extract_strided_slice %296 {offsets = [0, 256], sizes = [8, 128], strides = [1, 1]} : vector<8x384xf32> to vector<8x128xf32>
    %315 = arith.mulf %304, %314 : vector<8x128xf32>
    %316 = arith.addf %313, %315 : vector<8x128xf32>
    %317 = math.tanh %316 : vector<8x128xf32>
    %cst_67 = arith.constant 1.000000e+00 : f32
    %318 = vector.broadcast %cst_67 : f32 to vector<8x128xf32>
    %319 = arith.subf %318, %312 : vector<8x128xf32>
    %320 = arith.mulf %319, %317 : vector<8x128xf32>
    %321 = arith.mulf %312, %289 : vector<8x128xf32>
    %322 = arith.addf %320, %321 : vector<8x128xf32>
    %323 = arith.addi %6, %c6_i32 : i32
    %324 = vector.broadcast %323 : i32 to vector<8x1xi32>
    %325 = arith.cmpi sgt, %5, %324 : vector<8x1xi32>
    %cst_68 = arith.constant 0.000000e+00 : f32
    %326 = vector.shape_cast %325 : vector<8x1xi1> to vector<8x1xi1>
    %327 = vector.broadcast %326 : vector<8x1xi1> to vector<8x128xi1>
    %328 = vector.broadcast %cst_68 : f32 to vector<8x128xf32>
    %329 = arith.select %327, %322, %328 : vector<8x128xi1>, vector<8x128xf32>
    %330 = arith.index_cast %c6_i32 : i32 to index
    %c0_69 = arith.constant 0 : index
    %c0_70 = arith.constant 0 : index
    %331 = vector.load %arg6[%330, %c0_69, %c0_70] : memref<8x8x128xf32, #tpu.memory_space<vmem>>, vector<1x8x128xf32>
    %332 = vector.shape_cast %331 : vector<1x8x128xf32> to vector<8x128xf32>
    %333 = vector.shape_cast %329 : vector<8x128xf32> to vector<1x8x128xf32>
    tpu.vector_store %arg6[%330, %c0_69, %c0_70], %333 {strides = array<i32>} : memref<8x8x128xf32, #tpu.memory_space<vmem>>, vector<1x8x128xf32>,
    %334 = vector.shape_cast %325 : vector<8x1xi1> to vector<8x1xi1>
    %335 = vector.broadcast %334 : vector<8x1xi1> to vector<8x128xi1>
    %336 = arith.select %335, %322, %289 : vector<8x128xi1>, vector<8x128xf32>
    %c7_i32 = arith.constant 7 : i32
    %337 = arith.index_cast %c7_i32 : i32 to index
    %c0_71 = arith.constant 0 : index
    %c0_72 = arith.constant 0 : index
    %338 = vector.load %arg2[%337, %c0_71, %c0_72] : memref<8x8x384xf32, #tpu.memory_space<vmem>>, vector<1x8x384xf32>
    %339 = vector.shape_cast %338 : vector<1x8x384xf32> to vector<8x384xf32>
    %340 = arith.truncf %336 : vector<8x128xf32> to vector<8x128xbf16>
    %cst_73 = arith.constant dense<0.000000e+00> : vector<8x384xf32>
    %341 = tpu.matmul %340, %3, %cst_73 {dimension_numbers = #tpu.dot_dimension_numbers<[1], [0], [0], [1], [0, 0, 1, 1], [], []>} : vector<8x128xbf16>, vector<128x384xbf16>, vector<8x384xf32> -> vector<8x384xf32>
    %342 = vector.broadcast %4 : vector<1x384xf32> to vector<8x384xf32>
    %343 = arith.addf %341, %342 : vector<8x384xf32>
    %344 = vector.extract_strided_slice %339 {offsets = [0, 0], sizes = [8, 128], strides = [1, 1]} : vector<8x384xf32> to vector<8x128xf32>
    %345 = vector.extract_strided_slice %343 {offsets = [0, 0], sizes = [8, 128], strides = [1, 1]} : vector<8x384xf32> to vector<8x128xf32>
    %346 = arith.addf %344, %345 : vector<8x128xf32>
    %347 = arith.negf %346 : vector<8x128xf32>
    %348 = math.exp %347 : vector<8x128xf32>
    %cst_74 = arith.constant 1.000000e+00 : f32
    %349 = vector.broadcast %cst_74 : f32 to vector<8x128xf32>
    %350 = arith.addf %349, %348 : vector<8x128xf32>
    %351 = arith.divf %349, %350 : vector<8x128xf32>
    %352 = vector.extract_strided_slice %339 {offsets = [0, 128], sizes = [8, 128], strides = [1, 1]} : vector<8x384xf32> to vector<8x128xf32>
    %353 = vector.extract_strided_slice %343 {offsets = [0, 128], sizes = [8, 128], strides = [1, 1]} : vector<8x384xf32> to vector<8x128xf32>
    %354 = arith.addf %352, %353 : vector<8x128xf32>
    %355 = arith.negf %354 : vector<8x128xf32>
    %356 = math.exp %355 : vector<8x128xf32>
    %cst_75 = arith.constant 1.000000e+00 : f32
    %357 = vector.broadcast %cst_75 : f32 to vector<8x128xf32>
    %358 = arith.addf %357, %356 : vector<8x128xf32>
    %359 = arith.divf %357, %358 : vector<8x128xf32>
    %360 = vector.extract_strided_slice %339 {offsets = [0, 256], sizes = [8, 128], strides = [1, 1]} : vector<8x384xf32> to vector<8x128xf32>
    %361 = vector.extract_strided_slice %343 {offsets = [0, 256], sizes = [8, 128], strides = [1, 1]} : vector<8x384xf32> to vector<8x128xf32>
    %362 = arith.mulf %351, %361 : vector<8x128xf32>
    %363 = arith.addf %360, %362 : vector<8x128xf32>
    %364 = math.tanh %363 : vector<8x128xf32>
    %cst_76 = arith.constant 1.000000e+00 : f32
    %365 = vector.broadcast %cst_76 : f32 to vector<8x128xf32>
    %366 = arith.subf %365, %359 : vector<8x128xf32>
    %367 = arith.mulf %366, %364 : vector<8x128xf32>
    %368 = arith.mulf %359, %336 : vector<8x128xf32>
    %369 = arith.addf %367, %368 : vector<8x128xf32>
    %370 = arith.addi %6, %c7_i32 : i32
    %371 = vector.broadcast %370 : i32 to vector<8x1xi32>
    %372 = arith.cmpi sgt, %5, %371 : vector<8x1xi32>
    %cst_77 = arith.constant 0.000000e+00 : f32
    %373 = vector.shape_cast %372 : vector<8x1xi1> to vector<8x1xi1>
    %374 = vector.broadcast %373 : vector<8x1xi1> to vector<8x128xi1>
    %375 = vector.broadcast %cst_77 : f32 to vector<8x128xf32>
    %376 = arith.select %374, %369, %375 : vector<8x128xi1>, vector<8x128xf32>
    %377 = arith.index_cast %c7_i32 : i32 to index
    %c0_78 = arith.constant 0 : index
    %c0_79 = arith.constant 0 : index
    %378 = vector.load %arg6[%377, %c0_78, %c0_79] : memref<8x8x128xf32, #tpu.memory_space<vmem>>, vector<1x8x128xf32>
    %379 = vector.shape_cast %378 : vector<1x8x128xf32> to vector<8x128xf32>
    %380 = vector.shape_cast %376 : vector<8x128xf32> to vector<1x8x128xf32>
    tpu.vector_store %arg6[%377, %c0_78, %c0_79], %380 {strides = array<i32>} : memref<8x8x128xf32, #tpu.memory_space<vmem>>, vector<1x8x128xf32>,
    %381 = vector.shape_cast %372 : vector<8x1xi1> to vector<8x1xi1>
    %382 = vector.broadcast %381 : vector<8x1xi1> to vector<8x128xi1>
    %383 = arith.select %382, %369, %336 : vector<8x128xi1>, vector<8x128xf32>
    %c8_i32_80 = arith.constant 8 : i32
    %c0_81 = arith.constant 0 : index
    %c0_82 = arith.constant 0 : index
    %384 = vector.load %arg8[%c0_81, %c0_82] : memref<8x128xf32, #tpu.memory_space<vmem>>, vector<8x128xf32>
    tpu.vector_store %arg8[%c0_81, %c0_82], %383 {strides = array<i32>} : memref<8x128xf32, #tpu.memory_space<vmem>>, vector<8x128xf32>,
    %c0_i32_83 = arith.constant 0 : i32
    %385 = arith.cmpi eq, %arg1, %c0_i32_83 : i32
    %386 = arith.extui %385 : i1 to i32
    %c0_i32_84 = arith.constant 0 : i32
    %387 = arith.cmpi ne, %386, %c0_i32_84 : i32
    scf.if %387 {
      %c0_85 = arith.constant 0 : index
      %c0_86 = arith.constant 0 : index
      %388 = vector.load %arg7[%c0_85, %c0_86] : memref<8x128xf32, #tpu.memory_space<vmem>>, vector<8x128xf32>
      tpu.vector_store %arg7[%c0_85, %c0_86], %383 {strides = array<i32>} : memref<8x128xf32, #tpu.memory_space<vmem>>, vector<8x128xf32>,
    } else {
    }
    return
  }
  func.func @transform_0(%arg0: i32, %arg1: i32) -> (i32, i32, i32) {
    %c0_i32 = arith.constant 0 : i32
    %c0_i32_0 = arith.constant 0 : i32
    return %arg1, %arg0, %c0_i32 : i32, i32, i32
  }
  func.func @transform_1(%arg0: i32, %arg1: i32) -> (i32, i32) {
    %c0_i32 = arith.constant 0 : i32
    %c0_i32_0 = arith.constant 0 : i32
    return %arg0, %c0_i32 : i32, i32
  }
  func.func @transform_2(%arg0: i32, %arg1: i32) -> (i32, i32) {
    %c0_i32 = arith.constant 0 : i32
    %c0_i32_0 = arith.constant 0 : i32
    %c0_i32_1 = arith.constant 0 : i32
    return %c0_i32, %c0_i32_0 : i32, i32
  }
  func.func @transform_3(%arg0: i32, %arg1: i32) -> (i32, i32) {
    %c0_i32 = arith.constant 0 : i32
    %c0_i32_0 = arith.constant 0 : i32
    %c0_i32_1 = arith.constant 0 : i32
    return %c0_i32, %c0_i32_0 : i32, i32
  }
  func.func @transform_4(%arg0: i32, %arg1: i32) -> (i32, i32, i32) {
    %c0_i32 = arith.constant 0 : i32
    %c0_i32_0 = arith.constant 0 : i32
    return %arg1, %arg0, %c0_i32 : i32, i32, i32
  }
  func.func @transform_5(%arg0: i32, %arg1: i32) -> (i32, i32) {
    %c0_i32 = arith.constant 0 : i32
    %c0_i32_0 = arith.constant 0 : i32
    return %arg0, %c0_i32 : i32, i32
  }
}

</mosaic_0001>

<llo_original>
// kernel: hrnn_encoder_forward.3
$region0: #{hrnn_encoder_forward.3}
  #allocation0 [shape = 'u32[]', space=smem, size = 0x4, offset = 0x4, fixed_abs, tag = 'smem constant byte address 0x4 - core index']
  #allocation1 [shape = 'u32[144,128]{1,0:T(1,128)}', space=vmem, size = 0x12000, scoped, tag = 'internal scratch']
  #allocation2 [shape = 'f32[8,128]{1,0:T(8,128)}', space=vmem, size = 0x1000, scoped, tag = 'scratch operand']
  %s0 = inlined_call_operand.vmem [shape: f32[4,8,384], index: 0, kind: input, shape index: {}]
  %s1 = inlined_call_operand.vmem [shape: s32[8,1], index: 1, kind: input, shape index: {}]
  %s2 = inlined_call_operand.vmem [shape: bf16[128,384], index: 2, kind: input, shape index: {}]
  %s3 = inlined_call_operand.vmem [shape: f32[1,384], index: 3, kind: input, shape index: {}]
  %s4 = inlined_call_operand.vmem [shape: f32[4,8,128], index: 4, kind: output, shape index: {0}]
  %s5 = inlined_call_operand.vmem [shape: f32[8,128], index: 5, kind: output, shape index: {1}]
  %6 = xla_tuple %s4, %s5
  %s7 = sld [smem:[#allocation0]]
  $region42: #{hrnn_encoder_forward.3} parent=0
    _
  %s9 = ssub.s32 1, %s7
  %s10 = scalar_select 0, %s9, %s7
  // Predicated region
  $region2: #{hrnn_encoder_forward.3} parent=0 // pred_check
    _
  $region3: #{hrnn_encoder_forward.3} parent=0 // pred_check_branch
    %12 = sbr.rel (0) target = $region5
  $region4: #{hrnn_encoder_forward.3} parent=0 // pred_region
    _
  $region5: #{hrnn_encoder_forward.3} parent=0 // pred_fallthru
    _
  // Predicated region
  $region6: #{hrnn_encoder_forward.3} parent=0 // pred_check
    _
  $region7: #{hrnn_encoder_forward.3} parent=0 // pred_check_branch
    %14 = sbr.rel (0) target = $region9
  $region8: #{hrnn_encoder_forward.3} parent=0 // pred_region
    _
  $region9: #{hrnn_encoder_forward.3} parent=0 // pred_fallthru
    _
  // Predicated region
  $region10: #{hrnn_encoder_forward.3} parent=0 // pred_check
    _
  $region11: #{hrnn_encoder_forward.3} parent=0 // pred_check_branch
    %16 = sbr.rel (0) target = $region13
  $region12: #{hrnn_encoder_forward.3} parent=0 // pred_region
    _
  $region13: #{hrnn_encoder_forward.3} parent=0 // pred_fallthru
    _
  // Predicated region
  $region14: #{hrnn_encoder_forward.3} parent=0 // pred_check
    _
  $region15: #{hrnn_encoder_forward.3} parent=0 // pred_check_branch
    %18 = sbr.rel (0) target = $region17
  $region16: #{hrnn_encoder_forward.3} parent=0 // pred_region
    _
  $region17: #{hrnn_encoder_forward.3} parent=0 // pred_fallthru
    _
  %p20 = scmp.eq.s32.totalorder 0, 0
  // Predicated region
  $region18: #{hrnn_encoder_forward.3} parent=0 // pred_check
    %p21 = pneg %p20
  $region19: #{hrnn_encoder_forward.3} parent=0 // pred_check_branch
    %23 = sbr.rel (%p21) target = $region21
  $region20: #{hrnn_encoder_forward.3} parent=0 // pred_region
    %24 = vst [vmem:[#allocation2] sm:$0xff] 0.0
  $region21: #{hrnn_encoder_forward.3} parent=0 // pred_fallthru
    _
  %v25 = vld [vmem:[%s2] sm:$0xff]
  %v26 = vld [vmem:[%s2 + $0x8] sm:$0xf]
  %v27 = vld [vmem:[%s2 + $0xc] sm:$0xff]
  %v28 = vld [vmem:[%s2 + $0x14] sm:$0xf]
  %v29 = vld [vmem:[%s2 + $0x18] sm:$0xff]
  %v30 = vld [vmem:[%s2 + $0x20] sm:$0xf]
  %v31 = vld [vmem:[%s2 + $0x24] sm:$0xff]
  %v32 = vld [vmem:[%s2 + $0x2c] sm:$0xf]
  %v33 = vld [vmem:[%s2 + $0x30] sm:$0xff]
  %v34 = vld [vmem:[%s2 + $0x38] sm:$0xf]
  %v35 = vld [vmem:[%s2 + $0x3c] sm:$0xff]
  %v36 = vld [vmem:[%s2 + $0x44] sm:$0xf]
  %v37 = vld [vmem:[%s2 + $0x48] sm:$0xff]
  %v38 = vld [vmem:[%s2 + $0x50] sm:$0xf]
  %v39 = vld [vmem:[%s2 + $0x54] sm:$0xff]
  %v40 = vld [vmem:[%s2 + $0x5c] sm:$0xf]
  %v41 = vld [vmem:[%s2 + $0x60] sm:$0xff]
  %v42 = vld [vmem:[%s2 + $0x68] sm:$0xf]
  %v43 = vld [vmem:[%s2 + $0x6c] sm:$0xff]
  %v44 = vld [vmem:[%s2 + $0x74] sm:$0xf]
  %v45 = vld [vmem:[%s2 + $0x78] sm:$0xff]
  %v46 = vld [vmem:[%s2 + $0x80] sm:$0xf]
  %v47 = vld [vmem:[%s2 + $0x84] sm:$0xff]
  %v48 = vld [vmem:[%s2 + $0x8c] sm:$0xf]
  %v49 = vld [vmem:[%s2 + $0x90] sm:$0xff]
  %v50 = vld [vmem:[%s2 + $0x98] sm:$0xf]
  %v51 = vld [vmem:[%s2 + $0x9c] sm:$0xff]
  %v52 = vld [vmem:[%s2 + $0xa4] sm:$0xf]
  %v53 = vld [vmem:[%s2 + $0xa8] sm:$0xff]
  %v54 = vld [vmem:[%s2 + $0xb0] sm:$0xf]
  %v55 = vld [vmem:[%s2 + $0xb4] sm:$0xff]
  %v56 = vld [vmem:[%s2 + $0xbc] sm:$0xf]
  %v57 = vld [vmem:[%s3] sm:$0x7]
  %v58 = vld [vmem:[%s1] sm:$0xff]
  %s59 = smul.u32 0, 4
  %v60 = vld [vmem:[#allocation2] sm:$0xff]
  %v61 = vld [vmem:[%s0] sm:$0xff]
  %v62 = vld [vmem:[%s0 + $0x8] sm:$0xff]
  %v63 = vld [vmem:[%s0 + $0x10] sm:$0xff]
  %v64 = vpack.c.bf16 %v60, %v60
  %v66 = vlaneseq
  %v67 = vshrl.u32 %v66, 7
  %v68 = vsub.s32 0, %v67
  %v69 = vrot.slane %v57, %v68
  %v70 = vlaneseq
  %v71 = vshrl.u32 %v70, 7
  %v72 = vsub.s32 1, %v71
  %v73 = vrot.slane %v57, %v72
  %v74 = vlaneseq
  %v75 = vshrl.u32 %v74, 7
  %v76 = vsub.s32 2, %v75
  %v77 = vrot.slane %v57, %v76
  %v113 = vunpack.c.l.b16 %v25
  %v114 = vunpack.c.h.b16 %v25
  %v115 = vunpack.c.l.b16 %v26
  %v116 = vunpack.c.l.b16 %v27
  %v117 = vunpack.c.h.b16 %v27
  %v118 = vunpack.c.l.b16 %v28
  %v119 = vunpack.c.l.b16 %v29
  %v120 = vunpack.c.h.b16 %v29
  %v121 = vunpack.c.l.b16 %v30
  %v122 = vunpack.c.l.b16 %v31
  %v123 = vunpack.c.h.b16 %v31
  %v124 = vunpack.c.l.b16 %v32
  %v125 = vunpack.c.l.b16 %v33
  %v126 = vunpack.c.h.b16 %v33
  %v127 = vunpack.c.l.b16 %v34
  %v128 = vunpack.c.l.b16 %v35
  %v129 = vunpack.c.h.b16 %v35
  %v130 = vunpack.c.l.b16 %v36
  %v131 = vunpack.c.l.b16 %v37
  %v132 = vunpack.c.h.b16 %v37
  %v133 = vunpack.c.l.b16 %v38
  %v134 = vunpack.c.l.b16 %v39
  %v135 = vunpack.c.h.b16 %v39
  %v136 = vunpack.c.l.b16 %v40
  %v137 = vunpack.c.l.b16 %v41
  %v138 = vunpack.c.h.b16 %v41
  %v139 = vunpack.c.l.b16 %v42
  %v140 = vunpack.c.l.b16 %v43
  %v141 = vunpack.c.h.b16 %v43
  %v142 = vunpack.c.l.b16 %v44
  %v143 = vunpack.c.l.b16 %v45
  %v144 = vunpack.c.h.b16 %v45
  %v145 = vunpack.c.l.b16 %v46
  %v146 = vunpack.c.l.b16 %v47
  %v147 = vunpack.c.h.b16 %v47
  %v148 = vunpack.c.l.b16 %v48
  %v149 = vunpack.c.l.b16 %v49
  %v150 = vunpack.c.h.b16 %v49
  %v151 = vunpack.c.l.b16 %v50
  %v152 = vunpack.c.l.b16 %v51
  %v153 = vunpack.c.h.b16 %v51
  %v154 = vunpack.c.l.b16 %v52
  %v155 = vunpack.c.l.b16 %v53
  %v156 = vunpack.c.h.b16 %v53
  %v157 = vunpack.c.l.b16 %v54
  %v158 = vunpack.c.l.b16 %v55
  %v159 = vunpack.c.h.b16 %v55
  %v160 = vunpack.c.l.b16 %v56
  %v161 = vpack.c.b16 %v116, %v113
  %v162 = vpack.c.b16 %v117, %v114
  %v163 = vpack.c.b16 %v118, %v115
  %v164 = vpack.c.b16 %v122, %v119
  %v165 = vpack.c.b16 %v123, %v120
  %v166 = vpack.c.b16 %v124, %v121
  %v167 = vpack.c.b16 %v128, %v125
  %v168 = vpack.c.b16 %v129, %v126
  %v169 = vpack.c.b16 %v130, %v127
  %v170 = vpack.c.b16 %v134, %v131
  %v171 = vpack.c.b16 %v135, %v132
  %v172 = vpack.c.b16 %v136, %v133
  %v173 = vpack.c.b16 %v140, %v137
  %v174 = vpack.c.b16 %v141, %v138
  %v175 = vpack.c.b16 %v142, %v139
  %v176 = vpack.c.b16 %v146, %v143
  %v177 = vpack.c.b16 %v147, %v144
  %v178 = vpack.c.b16 %v148, %v145
  %v179 = vpack.c.b16 %v152, %v149
  %v180 = vpack.c.b16 %v153, %v150
  %v181 = vpack.c.b16 %v154, %v151
  %v182 = vpack.c.b16 %v158, %v155
  %v183 = vpack.c.b16 %v159, %v156
  %v184 = vpack.c.b16 %v160, %v157
  %209 = vmatprep.subr.bf16.mxu0 %v183
  %210 = vmatpush1.bf16.msra.mxu0 %v182
  %211 = vmatprep.subr.bf16.mxu0 %v180
  %212 = vmatpush1.bf16.msra.mxu0 %v179
  %213 = vmatprep.subr.bf16.mxu0 %v177
  %214 = vmatpush1.bf16.msra.mxu0 %v176
  %215 = vmatprep.subr.bf16.mxu0 %v174
  %216 = vmatpush1.bf16.msra.mxu0 %v173
  %217 = vmatprep.subr.bf16.mxu0 %v171
  %218 = vmatpush1.bf16.msra.mxu0 %v170
  %219 = vmatprep.subr.bf16.mxu0 %v168
  %220 = vmatpush1.bf16.msra.mxu0 %v167
  %221 = vmatprep.subr.bf16.mxu0 %v165
  %222 = vmatpush1.bf16.msra.mxu0 %v164
  %223 = vmatprep.subr.bf16.mxu0 %v162
  %224 = vmatpush1.bf16.msra.mxu0 %v161
  %225 = vmatprep.subr.bf16.mxu0 0
  %226 = vmatpush2.bf16.msra.mxu0 0
  %227 = vmatprep.subr.bf16.mxu0 0
  %228 = vmatpush2.bf16.msra.mxu0 0
  %229 = vmatprep.subr.bf16.mxu0 0
  %230 = vmatpush2.bf16.msra.mxu0 0
  %231 = vmatprep.subr.bf16.mxu0 0
  %232 = vmatpush2.bf16.msra.mxu0 0
  %233 = vmatprep.subr.bf16.mxu0 0
  %234 = vmatpush2.bf16.msra.mxu0 0
  %235 = vmatprep.subr.bf16.mxu0 0
  %236 = vmatpush2.bf16.msra.mxu0 0
  %237 = vmatprep.subr.bf16.mxu0 0
  %238 = vmatpush2.bf16.msra.mxu0 0
  %239 = vmatprep.subr.bf16.mxu0 0
  %240 = vmatpush2.bf16.msra.mxu0 0
  %241 = vmatprep.mubr.bf16.mxu0 0
  %242 = vmatmul.mubr.bf16.gmra.mxu0 %v64
  %v243 = vpop.f32.mrf.mxu0
  %v244 = vadd.f32 %v69, %v243
  %v245 = vpop.f32.mrf.mxu0
  %v246 = vadd.f32 %v73, %v245
  %v247 = vpop.f32.mrf.mxu0
  %v248 = vpop.f32.mrf.mxu0
  %249 = vdwg.mxu0
  %250 = vmatprep.subr.bf16.mxu0 0
  %251 = vmatpush1.bf16.msra.mxu0 %v184
  %252 = vmatprep.subr.bf16.mxu0 0
  %253 = vmatpush1.bf16.msra.mxu0 %v181
  %254 = vmatprep.subr.bf16.mxu0 0
  %255 = vmatpush1.bf16.msra.mxu0 %v178
  %256 = vmatprep.subr.bf16.mxu0 0
  %257 = vmatpush1.bf16.msra.mxu0 %v175
  %258 = vmatprep.subr.bf16.mxu0 0
  %259 = vmatpush1.bf16.msra.mxu0 %v172
  %260 = vmatprep.subr.bf16.mxu0 0
  %261 = vmatpush1.bf16.msra.mxu0 %v169
  %262 = vmatprep.subr.bf16.mxu0 0
  %263 = vmatpush1.bf16.msra.mxu0 %v166
  %264 = vmatprep.subr.bf16.mxu0 0
  %265 = vmatpush1.bf16.msra.mxu0 %v163
  %266 = vmatprep.subr.bf16.mxu0 0
  %267 = vmatpush2.bf16.msra.mxu0 0
  %268 = vmatprep.subr.bf16.mxu0 0
  %269 = vmatpush2.bf16.msra.mxu0 0
  %270 = vmatprep.subr.bf16.mxu0 0
  %271 = vmatpush2.bf16.msra.mxu0 0
  %272 = vmatprep.subr.bf16.mxu0 0
  %273 = vmatpush2.bf16.msra.mxu0 0
  %274 = vmatprep.subr.bf16.mxu0 0
  %275 = vmatpush2.bf16.msra.mxu0 0
  %276 = vmatprep.subr.bf16.mxu0 0
  %277 = vmatpush2.bf16.msra.mxu0 0
  %278 = vmatprep.subr.bf16.mxu0 0
  %279 = vmatpush2.bf16.msra.mxu0 0
  %280 = vmatprep.subr.bf16.mxu0 0
  %281 = vmatpush2.bf16.msra.mxu0 0
  %282 = vmatprep.mubr.bf16.mxu0 0
  %283 = vmatmul.mubr.bf16.gmra.mxu0 %v64
  %v284 = vpop.f32.mrf.mxu0
  %v285 = vadd.f32 %v77, %v284
  %v286 = vpop.f32.mrf.mxu0
  %v287 = vpop.f32.mrf.mxu0
  %v288 = vpop.f32.mrf.mxu0
  %289 = vdwg.mxu0
  %v290 = vadd.f32 %v61, %v244
  %v291 = vxor.u32 %v290, 2147483648
  %v292 = vmul.f32 %v291, 1.442695
  %v293 = vpow.pop %v292
  %v294 = vadd.f32 %v293, 1.0
  %v295 = vrcp.pop %v294
  %v296 = vmul.f32 1.0, %v295
  %v297 = vadd.f32 %v62, %v246
  %v298 = vxor.u32 %v297, 2147483648
  %v299 = vmul.f32 %v298, 1.442695
  %v300 = vpow.pop %v299
  %v301 = vadd.f32 %v300, 1.0
  %v302 = vrcp.pop %v301
  %v303 = vmul.f32 1.0, %v302
  %v304 = vmul.f32 %v296, %v285
  %v305 = vadd.f32 %v63, %v304
  %v306 = vtanh.pop %v305
  %v307 = vsub.f32 1.0, %v303
  %v308 = vmul.f32 %v307, %v306
  %v309 = vmul.f32 %v303, %v60
  %v310 = vadd.f32 %v308, %v309
  %v311 = vstv %s59
  %vm312 = vcmp.gt.s32.totalorder %v58, %v311
  %v313 = vsel %vm312, 1, 0
  %314 = vset.pattern.permute.xlu0 0
  %315 = vperm.xlu0 %314, %v313
  %v316 = vpop.permute.xlu0 %315
  %vm317 = vcmp.eq.s32.totalorder %v316, 1
  %v318 = vsel %vm317, %v310, 0.0
  %319 = vst [vmem:[%s4] sm:$0xff] %v318
  %v320 = vsel %vm317, %v310, %v60
  %s321 = scalar_lea.vmem %s0, 24
  %v322 = vld [vmem:[%s321] sm:$0xff]
  %v323 = vld [vmem:[%s321 + $0x8] sm:$0xff]
  %v324 = vld [vmem:[%s321 + $0x10] sm:$0xff]
  %v325 = vpack.c.bf16 %v320, %v320
  %326 = vmatprep.subr.bf16.mxu0 %v183
  %327 = vmatpush1.bf16.msra.mxu0 %v182
  %328 = vmatprep.subr.bf16.mxu0 %v180
  %329 = vmatpush1.bf16.msra.mxu0 %v179
  %330 = vmatprep.subr.bf16.mxu0 %v177
  %331 = vmatpush1.bf16.msra.mxu0 %v176
  %332 = vmatprep.subr.bf16.mxu0 %v174
  %333 = vmatpush1.bf16.msra.mxu0 %v173
  %334 = vmatprep.subr.bf16.mxu0 %v171
  %335 = vmatpush1.bf16.msra.mxu0 %v170
  %336 = vmatprep.subr.bf16.mxu0 %v168
  %337 = vmatpush1.bf16.msra.mxu0 %v167
  %338 = vmatprep.subr.bf16.mxu0 %v165
  %339 = vmatpush1.bf16.msra.mxu0 %v164
  %340 = vmatprep.subr.bf16.mxu0 %v162
  %341 = vmatpush1.bf16.msra.mxu0 %v161
  %342 = vmatprep.subr.bf16.mxu0 0
  %343 = vmatpush2.bf16.msra.mxu0 0
  %344 = vmatprep.subr.bf16.mxu0 0
  %345 = vmatpush2.bf16.msra.mxu0 0
  %346 = vmatprep.subr.bf16.mxu0 0
  %347 = vmatpush2.bf16.msra.mxu0 0
  %348 = vmatprep.subr.bf16.mxu0 0
  %349 = vmatpush2.bf16.msra.mxu0 0
  %350 = vmatprep.subr.bf16.mxu0 0
  %351 = vmatpush2.bf16.msra.mxu0 0
  %352 = vmatprep.subr.bf16.mxu0 0
  %353 = vmatpush2.bf16.msra.mxu0 0
  %354 = vmatprep.subr.bf16.mxu0 0
  %355 = vmatpush2.bf16.msra.mxu0 0
  %356 = vmatprep.subr.bf16.mxu0 0
  %357 = vmatpush2.bf16.msra.mxu0 0
  %358 = vmatprep.mubr.bf16.mxu0 0
  %359 = vmatmul.mubr.bf16.gmra.mxu0 %v325
  %v360 = vpop.f32.mrf.mxu0
  %v361 = vadd.f32 %v69, %v360
  %v362 = vpop.f32.mrf.mxu0
  %v363 = vadd.f32 %v73, %v362
  %v364 = vpop.f32.mrf.mxu0
  %v365 = vpop.f32.mrf.mxu0
  %366 = vdwg.mxu0
  %367 = vmatprep.subr.bf16.mxu0 0
  %368 = vmatpush1.bf16.msra.mxu0 %v184
  %369 = vmatprep.subr.bf16.mxu0 0
  %370 = vmatpush1.bf16.msra.mxu0 %v181
  %371 = vmatprep.subr.bf16.mxu0 0
  %372 = vmatpush1.bf16.msra.mxu0 %v178
  %373 = vmatprep.subr.bf16.mxu0 0
  %374 = vmatpush1.bf16.msra.mxu0 %v175
  %375 = vmatprep.subr.bf16.mxu0 0
  %376 = vmatpush1.bf16.msra.mxu0 %v172
  %377 = vmatprep.subr.bf16.mxu0 0
  %378 = vmatpush1.bf16.msra.mxu0 %v169
  %379 = vmatprep.subr.bf16.mxu0 0
  %380 = vmatpush1.bf16.msra.mxu0 %v166
  %381 = vmatprep.subr.bf16.mxu0 0
  %382 = vmatpush1.bf16.msra.mxu0 %v163
  %383 = vmatprep.subr.bf16.mxu0 0
  %384 = vmatpush2.bf16.msra.mxu0 0
  %385 = vmatprep.subr.bf16.mxu0 0
  %386 = vmatpush2.bf16.msra.mxu0 0
  %387 = vmatprep.subr.bf16.mxu0 0
  %388 = vmatpush2.bf16.msra.mxu0 0
  %389 = vmatprep.subr.bf16.mxu0 0
  %390 = vmatpush2.bf16.msra.mxu0 0
  %391 = vmatprep.subr.bf16.mxu0 0
  %392 = vmatpush2.bf16.msra.mxu0 0
  %393 = vmatprep.subr.bf16.mxu0 0
  %394 = vmatpush2.bf16.msra.mxu0 0
  %395 = vmatprep.subr.bf16.mxu0 0
  %396 = vmatpush2.bf16.msra.mxu0 0
  %397 = vmatprep.subr.bf16.mxu0 0
  %398 = vmatpush2.bf16.msra.mxu0 0
  %399 = vmatprep.mubr.bf16.mxu0 0
  %400 = vmatmul.mubr.bf16.gmra.mxu0 %v325
  %v401 = vpop.f32.mrf.mxu0
  %v402 = vadd.f32 %v77, %v401
  %v403 = vpop.f32.mrf.mxu0
  %v404 = vpop.f32.mrf.mxu0
  %v405 = vpop.f32.mrf.mxu0
  %406 = vdwg.mxu0
  %v407 = vadd.f32 %v322, %v361
  %v408 = vxor.u32 %v407, 2147483648
  %v409 = vmul.f32 %v408, 1.442695
  %v410 = vpow.pop %v409
  %v411 = vadd.f32 %v410, 1.0
  %v412 = vrcp.pop %v411
  %v413 = vmul.f32 1.0, %v412
  %v414 = vadd.f32 %v323, %v363
  %v415 = vxor.u32 %v414, 2147483648
  %v416 = vmul.f32 %v415, 1.442695
  %v417 = vpow.pop %v416
  %v418 = vadd.f32 %v417, 1.0
  %v419 = vrcp.pop %v418
  %v420 = vmul.f32 1.0, %v419
  %v421 = vmul.f32 %v413, %v402
  %v422 = vadd.f32 %v324, %v421
  %v423 = vtanh.pop %v422
  %v424 = vsub.f32 1.0, %v420
  %v425 = vmul.f32 %v424, %v423
  %v426 = vmul.f32 %v420, %v320
  %v427 = vadd.f32 %v425, %v426
  %s428 = sadd.s32 %s59, 1
  %v429 = vstv %s428
  %vm430 = vcmp.gt.s32.totalorder %v58, %v429
  %v431 = vsel %vm430, 1, 0
  %432 = vset.pattern.permute.xlu0 0
  %433 = vperm.xlu0 %432, %v431
  %v434 = vpop.permute.xlu0 %433
  %vm435 = vcmp.eq.s32.totalorder %v434, 1
  %v436 = vsel %vm435, %v427, 0.0
  %s437 = scalar_lea.vmem %s4, 8
  %438 = vst [vmem:[%s437] sm:$0xff] %v436
  %v439 = vsel %vm435, %v427, %v320
  %s440 = scalar_lea.vmem %s0, 48
  %v441 = vld [vmem:[%s440] sm:$0xff]
  %v442 = vld [vmem:[%s440 + $0x8] sm:$0xff]
  %v443 = vld [vmem:[%s440 + $0x10] sm:$0xff]
  %v444 = vpack.c.bf16 %v439, %v439
  %445 = vmatprep.subr.bf16.mxu0 %v183
  %446 = vmatpush1.bf16.msra.mxu0 %v182
  %447 = vmatprep.subr.bf16.mxu0 %v180
  %448 = vmatpush1.bf16.msra.mxu0 %v179
  %449 = vmatprep.subr.bf16.mxu0 %v177
  %450 = vmatpush1.bf16.msra.mxu0 %v176
  %451 = vmatprep.subr.bf16.mxu0 %v174
  %452 = vmatpush1.bf16.msra.mxu0 %v173
  %453 = vmatprep.subr.bf16.mxu0 %v171
  %454 = vmatpush1.bf16.msra.mxu0 %v170
  %455 = vmatprep.subr.bf16.mxu0 %v168
  %456 = vmatpush1.bf16.msra.mxu0 %v167
  %457 = vmatprep.subr.bf16.mxu0 %v165
  %458 = vmatpush1.bf16.msra.mxu0 %v164
  %459 = vmatprep.subr.bf16.mxu0 %v162
  %460 = vmatpush1.bf16.msra.mxu0 %v161
  %461 = vmatprep.subr.bf16.mxu0 0
  %462 = vmatpush2.bf16.msra.mxu0 0
  %463 = vmatprep.subr.bf16.mxu0 0
  %464 = vmatpush2.bf16.msra.mxu0 0
  %465 = vmatprep.subr.bf16.mxu0 0
  %466 = vmatpush2.bf16.msra.mxu0 0
  %467 = vmatprep.subr.bf16.mxu0 0
  %468 = vmatpush2.bf16.msra.mxu0 0
  %469 = vmatprep.subr.bf16.mxu0 0
  %470 = vmatpush2.bf16.msra.mxu0 0
  %471 = vmatprep.subr.bf16.mxu0 0
  %472 = vmatpush2.bf16.msra.mxu0 0
  %473 = vmatprep.subr.bf16.mxu0 0
  %474 = vmatpush2.bf16.msra.mxu0 0
  %475 = vmatprep.subr.bf16.mxu0 0
  %476 = vmatpush2.bf16.msra.mxu0 0
  %477 = vmatprep.mubr.bf16.mxu0 0
  %478 = vmatmul.mubr.bf16.gmra.mxu0 %v444
  %v479 = vpop.f32.mrf.mxu0
  %v480 = vadd.f32 %v69, %v479
  %v481 = vpop.f32.mrf.mxu0
  %v482 = vadd.f32 %v73, %v481
  %v483 = vpop.f32.mrf.mxu0
  %v484 = vpop.f32.mrf.mxu0
  %485 = vdwg.mxu0
  %486 = vmatprep.subr.bf16.mxu0 0
  %487 = vmatpush1.bf16.msra.mxu0 %v184
  %488 = vmatprep.subr.bf16.mxu0 0
  %489 = vmatpush1.bf16.msra.mxu0 %v181
  %490 = vmatprep.subr.bf16.mxu0 0
  %491 = vmatpush1.bf16.msra.mxu0 %v178
  %492 = vmatprep.subr.bf16.mxu0 0
  %493 = vmatpush1.bf16.msra.mxu0 %v175
  %494 = vmatprep.subr.bf16.mxu0 0
  %495 = vmatpush1.bf16.msra.mxu0 %v172
  %496 = vmatprep.subr.bf16.mxu0 0
  %497 = vmatpush1.bf16.msra.mxu0 %v169
  %498 = vmatprep.subr.bf16.mxu0 0
  %499 = vmatpush1.bf16.msra.mxu0 %v166
  %500 = vmatprep.subr.bf16.mxu0 0
  %501 = vmatpush1.bf16.msra.mxu0 %v163
  %502 = vmatprep.subr.bf16.mxu0 0
  %503 = vmatpush2.bf16.msra.mxu0 0
  %504 = vmatprep.subr.bf16.mxu0 0
  %505 = vmatpush2.bf16.msra.mxu0 0
  %506 = vmatprep.subr.bf16.mxu0 0
  %507 = vmatpush2.bf16.msra.mxu0 0
  %508 = vmatprep.subr.bf16.mxu0 0
  %509 = vmatpush2.bf16.msra.mxu0 0
  %510 = vmatprep.subr.bf16.mxu0 0
  %511 = vmatpush2.bf16.msra.mxu0 0
  %512 = vmatprep.subr.bf16.mxu0 0
  %513 = vmatpush2.bf16.msra.mxu0 0
  %514 = vmatprep.subr.bf16.mxu0 0
  %515 = vmatpush2.bf16.msra.mxu0 0
  %516 = vmatprep.subr.bf16.mxu0 0
  %517 = vmatpush2.bf16.msra.mxu0 0
  %518 = vmatprep.mubr.bf16.mxu0 0
  %519 = vmatmul.mubr.bf16.gmra.mxu0 %v444
  %v520 = vpop.f32.mrf.mxu0
  %v521 = vadd.f32 %v77, %v520
  %v522 = vpop.f32.mrf.mxu0
  %v523 = vpop.f32.mrf.mxu0
  %v524 = vpop.f32.mrf.mxu0
  %525 = vdwg.mxu0
  %v526 = vadd.f32 %v441, %v480
  %v527 = vxor.u32 %v526, 2147483648
  %v528 = vmul.f32 %v527, 1.442695
  %v529 = vpow.pop %v528
  %v530 = vadd.f32 %v529, 1.0
  %v531 = vrcp.pop %v530
  %v532 = vmul.f32 1.0, %v531
  %v533 = vadd.f32 %v442, %v482
  %v534 = vxor.u32 %v533, 2147483648
  %v535 = vmul.f32 %v534, 1.442695
  %v536 = vpow.pop %v535
  %v537 = vadd.f32 %v536, 1.0
  %v538 = vrcp.pop %v537
  %v539 = vmul.f32 1.0, %v538
  %v540 = vmul.f32 %v532, %v521
  %v541 = vadd.f32 %v443, %v540
  %v542 = vtanh.pop %v541
  %v543 = vsub.f32 1.0, %v539
  %v544 = vmul.f32 %v543, %v542
  %v545 = vmul.f32 %v539, %v439
  %v546 = vadd.f32 %v544, %v545
  %s547 = sadd.s32 %s59, 2
  %v548 = vstv %s547
  %vm549 = vcmp.gt.s32.totalorder %v58, %v548
  %v550 = vsel %vm549, 1, 0
  %551 = vset.pattern.permute.xlu0 0
  %552 = vperm.xlu0 %551, %v550
  %v553 = vpop.permute.xlu0 %552
  %vm554 = vcmp.eq.s32.totalorder %v553, 1
  %v555 = vsel %vm554, %v546, 0.0
  %s556 = scalar_lea.vmem %s4, 16
  %557 = vst [vmem:[%s556] sm:$0xff] %v555
  %v558 = vsel %vm554, %v546, %v439
  %s559 = scalar_lea.vmem %s0, 72
  %v560 = vld [vmem:[%s559] sm:$0xff]
  %v561 = vld [vmem:[%s559 + $0x8] sm:$0xff]
  %v562 = vld [vmem:[%s559 + $0x10] sm:$0xff]
  %v563 = vpack.c.bf16 %v558, %v558
  %564 = vmatprep.subr.bf16.mxu0 %v183
  %565 = vmatpush1.bf16.msra.mxu0 %v182
  %566 = vmatprep.subr.bf16.mxu0 %v180
  %567 = vmatpush1.bf16.msra.mxu0 %v179
  %568 = vmatprep.subr.bf16.mxu0 %v177
  %569 = vmatpush1.bf16.msra.mxu0 %v176
  %570 = vmatprep.subr.bf16.mxu0 %v174
  %571 = vmatpush1.bf16.msra.mxu0 %v173
  %572 = vmatprep.subr.bf16.mxu0 %v171
  %573 = vmatpush1.bf16.msra.mxu0 %v170
  %574 = vmatprep.subr.bf16.mxu0 %v168
  %575 = vmatpush1.bf16.msra.mxu0 %v167
  %576 = vmatprep.subr.bf16.mxu0 %v165
  %577 = vmatpush1.bf16.msra.mxu0 %v164
  %578 = vmatprep.subr.bf16.mxu0 %v162
  %579 = vmatpush1.bf16.msra.mxu0 %v161
  %580 = vmatprep.subr.bf16.mxu0 0
  %581 = vmatpush2.bf16.msra.mxu0 0
  %582 = vmatprep.subr.bf16.mxu0 0
  %583 = vmatpush2.bf16.msra.mxu0 0
  %584 = vmatprep.subr.bf16.mxu0 0
  %585 = vmatpush2.bf16.msra.mxu0 0
  %586 = vmatprep.subr.bf16.mxu0 0
  %587 = vmatpush2.bf16.msra.mxu0 0
  %588 = vmatprep.subr.bf16.mxu0 0
  %589 = vmatpush2.bf16.msra.mxu0 0
  %590 = vmatprep.subr.bf16.mxu0 0
  %591 = vmatpush2.bf16.msra.mxu0 0
  %592 = vmatprep.subr.bf16.mxu0 0
  %593 = vmatpush2.bf16.msra.mxu0 0
  %594 = vmatprep.subr.bf16.mxu0 0
  %595 = vmatpush2.bf16.msra.mxu0 0
  %596 = vmatprep.mubr.bf16.mxu0 0
  %597 = vmatmul.mubr.bf16.gmra.mxu0 %v563
  %v598 = vpop.f32.mrf.mxu0
  %v599 = vadd.f32 %v69, %v598
  %v600 = vpop.f32.mrf.mxu0
  %v601 = vadd.f32 %v73, %v600
  %v602 = vpop.f32.mrf.mxu0
  %v603 = vpop.f32.mrf.mxu0
  %604 = vdwg.mxu0
  %605 = vmatprep.subr.bf16.mxu0 0
  %606 = vmatpush1.bf16.msra.mxu0 %v184
  %607 = vmatprep.subr.bf16.mxu0 0
  %608 = vmatpush1.bf16.msra.mxu0 %v181
  %609 = vmatprep.subr.bf16.mxu0 0
  %610 = vmatpush1.bf16.msra.mxu0 %v178
  %611 = vmatprep.subr.bf16.mxu0 0
  %612 = vmatpush1.bf16.msra.mxu0 %v175
  %613 = vmatprep.subr.bf16.mxu0 0
  %614 = vmatpush1.bf16.msra.mxu0 %v172
  %615 = vmatprep.subr.bf16.mxu0 0
  %616 = vmatpush1.bf16.msra.mxu0 %v169
  %617 = vmatprep.subr.bf16.mxu0 0
  %618 = vmatpush1.bf16.msra.mxu0 %v166
  %619 = vmatprep.subr.bf16.mxu0 0
  %620 = vmatpush1.bf16.msra.mxu0 %v163
  %621 = vmatprep.subr.bf16.mxu0 0
  %622 = vmatpush2.bf16.msra.mxu0 0
  %623 = vmatprep.subr.bf16.mxu0 0
  %624 = vmatpush2.bf16.msra.mxu0 0
  %625 = vmatprep.subr.bf16.mxu0 0
  %626 = vmatpush2.bf16.msra.mxu0 0
  %627 = vmatprep.subr.bf16.mxu0 0
  %628 = vmatpush2.bf16.msra.mxu0 0
  %629 = vmatprep.subr.bf16.mxu0 0
  %630 = vmatpush2.bf16.msra.mxu0 0
  %631 = vmatprep.subr.bf16.mxu0 0
  %632 = vmatpush2.bf16.msra.mxu0 0
  %633 = vmatprep.subr.bf16.mxu0 0
  %634 = vmatpush2.bf16.msra.mxu0 0
  %635 = vmatprep.subr.bf16.mxu0 0
  %636 = vmatpush2.bf16.msra.mxu0 0
  %637 = vmatprep.mubr.bf16.mxu0 0
  %638 = vmatmul.mubr.bf16.gmra.mxu0 %v563
  %v639 = vpop.f32.mrf.mxu0
  %v640 = vadd.f32 %v77, %v639
  %v641 = vpop.f32.mrf.mxu0
  %v642 = vpop.f32.mrf.mxu0
  %v643 = vpop.f32.mrf.mxu0
  %644 = vdwg.mxu0
  %v645 = vadd.f32 %v560, %v599
  %v646 = vxor.u32 %v645, 2147483648
  %v647 = vmul.f32 %v646, 1.442695
  %v648 = vpow.pop %v647
  %v649 = vadd.f32 %v648, 1.0
  %v650 = vrcp.pop %v649
  %v651 = vmul.f32 1.0, %v650
  %v652 = vadd.f32 %v561, %v601
  %v653 = vxor.u32 %v652, 2147483648
  %v654 = vmul.f32 %v653, 1.442695
  %v655 = vpow.pop %v654
  %v656 = vadd.f32 %v655, 1.0
  %v657 = vrcp.pop %v656
  %v658 = vmul.f32 1.0, %v657
  %v659 = vmul.f32 %v651, %v640
  %v660 = vadd.f32 %v562, %v659
  %v661 = vtanh.pop %v660
  %v662 = vsub.f32 1.0, %v658
  %v663 = vmul.f32 %v662, %v661
  %v664 = vmul.f32 %v658, %v558
  %v665 = vadd.f32 %v663, %v664
  %s666 = sadd.s32 %s59, 3
  %v667 = vstv %s666
  %vm668 = vcmp.gt.s32.totalorder %v58, %v667
  %v669 = vsel %vm668, 1, 0
  %670 = vset.pattern.permute.xlu0 0
  %671 = vperm.xlu0 %670, %v669
  %v672 = vpop.permute.xlu0 %671
  %vm673 = vcmp.eq.s32.totalorder %v672, 1
  %v674 = vsel %vm673, %v665, 0.0
  %s675 = scalar_lea.vmem %s4, 24
  %676 = vst [vmem:[%s675] sm:$0xff] %v674
  %v677 = vsel %vm673, %v665, %v558
  %678 = vst [vmem:[#allocation2] sm:$0xff] %v677
  // Predicated region
  $region22: #{hrnn_encoder_forward.3} parent=0 // pred_check
    %p679 = pneg %p20
  $region23: #{hrnn_encoder_forward.3} parent=0 // pred_check_branch
    %681 = sbr.rel (%p679) target = $region25
  $region24: #{hrnn_encoder_forward.3} parent=0 // pred_region
    %682 = vst [vmem:[%s5] sm:$0xff] %v677
  $region25: #{hrnn_encoder_forward.3} parent=0 // pred_fallthru
    _
  // Predicated region
  $region26: #{hrnn_encoder_forward.3} parent=0 // pred_check
    _
  $region27: #{hrnn_encoder_forward.3} parent=0 // pred_check_branch
    %684 = sbr.rel (0) target = $region29
  $region28: #{hrnn_encoder_forward.3} parent=0 // pred_region
    _
  $region29: #{hrnn_encoder_forward.3} parent=0 // pred_fallthru
    _
  // Predicated region
  $region30: #{hrnn_encoder_forward.3} parent=0 // pred_check
    _
  $region31: #{hrnn_encoder_forward.3} parent=0 // pred_check_branch
    %686 = sbr.rel (0) target = $region33
  $region32: #{hrnn_encoder_forward.3} parent=0 // pred_region
    _
  $region33: #{hrnn_encoder_forward.3} parent=0 // pred_fallthru
    _
  // Predicated region
  $region34: #{hrnn_encoder_forward.3} parent=0 // pred_check
    _
  $region35: #{hrnn_encoder_forward.3} parent=0 // pred_check_branch
    %688 = sbr.rel (0) target = $region37
  $region36: #{hrnn_encoder_forward.3} parent=0 // pred_region
    _
  $region37: #{hrnn_encoder_forward.3} parent=0 // pred_fallthru
    _
  // Predicated region
  $region38: #{hrnn_encoder_forward.3} parent=0 // pred_check
    _
  $region39: #{hrnn_encoder_forward.3} parent=0 // pred_check_branch
    %690 = sbr.rel (0) target = $region41
  $region40: #{hrnn_encoder_forward.3} parent=0 // pred_region
    _
  $region41: #{hrnn_encoder_forward.3} parent=0 // pred_fallthru
    _

// kernel: hrnn_encoder_forward.2
$region0: #{hrnn_encoder_forward.2}
  #allocation0 [shape = 'u32[]', space=smem, size = 0x4, offset = 0x4, fixed_abs, tag = 'smem constant byte address 0x4 - core index']
  #allocation1 [shape = 'u32[144,128]{1,0:T(1,128)}', space=vmem, size = 0x12000, scoped, tag = 'internal scratch']
  #allocation2 [shape = 'f32[8,128]{1,0:T(8,128)}', space=vmem, size = 0x1000, scoped, tag = 'scratch operand']
  %s0 = inlined_call_operand.vmem [shape: f32[8,8,384], index: 0, kind: input, shape index: {}]
  %s1 = inlined_call_operand.vmem [shape: s32[8,1], index: 1, kind: input, shape index: {}]
  %s2 = inlined_call_operand.vmem [shape: bf16[128,384], index: 2, kind: input, shape index: {}]
  %s3 = inlined_call_operand.vmem [shape: f32[1,384], index: 3, kind: input, shape index: {}]
  %s4 = inlined_call_operand.hbm [shape: f32[8,8,128], index: 4, kind: output, shape index: {0}]
  %s5 = inlined_call_operand.vmem [shape: f32[8,128], index: 5, kind: output, shape index: {1}]
  %6 = xla_tuple %s4, %s5
  %s7 = sld [smem:[#allocation0]]
  $region42: #{hrnn_encoder_forward.2} parent=0
    _
  %s9 = ssub.s32 1, %s7
  %s10 = scalar_select 0, %s9, %s7
  $region1: #{hrnn_encoder_forward.2} parent=0
    #allocation3 [shape = 'u8[32768]{0}', space=vmem, size = 0x8000, scoped, tag = 'output window, operand 0, single buffered']
    #allocation4 [shape = 's32[1]{0}', space=sflag, size = 0x4, scoped, tag = 'scoped memory for hrnn_encoder_forward.2']
    %11 = vsyncpa [#allocation4], 0
    // Predicated region
    $region2: #{hrnn_encoder_forward.2} parent=1 // pred_check
      _
    $region3: #{hrnn_encoder_forward.2} parent=1 // pred_check_branch
      %13 = sbr.rel (0) target = $region5
    $region4: #{hrnn_encoder_forward.2} parent=1 // pred_region
      _
    $region5: #{hrnn_encoder_forward.2} parent=1 // pred_fallthru
      _
    // Predicated region
    $region6: #{hrnn_encoder_forward.2} parent=1 // pred_check
      _
    $region7: #{hrnn_encoder_forward.2} parent=1 // pred_check_branch
      %15 = sbr.rel (0) target = $region9
    $region8: #{hrnn_encoder_forward.2} parent=1 // pred_region
      _
    $region9: #{hrnn_encoder_forward.2} parent=1 // pred_fallthru
      _
    // Predicated region
    $region10: #{hrnn_encoder_forward.2} parent=1 // pred_check
      _
    $region11: #{hrnn_encoder_forward.2} parent=1 // pred_check_branch
      %17 = sbr.rel (0) target = $region13
    $region12: #{hrnn_encoder_forward.2} parent=1 // pred_region
      _
    $region13: #{hrnn_encoder_forward.2} parent=1 // pred_fallthru
      _
    // Predicated region
    $region14: #{hrnn_encoder_forward.2} parent=1 // pred_check
      _
    $region15: #{hrnn_encoder_forward.2} parent=1 // pred_check_branch
      %19 = sbr.rel (0) target = $region17
    $region16: #{hrnn_encoder_forward.2} parent=1 // pred_region
      _
    $region17: #{hrnn_encoder_forward.2} parent=1 // pred_fallthru
      _
    %p21 = scmp.eq.s32.totalorder 0, 0
    // Predicated region
    $region18: #{hrnn_encoder_forward.2} parent=1 // pred_check
      %p22 = pneg %p21
    $region19: #{hrnn_encoder_forward.2} parent=1 // pred_check_branch
      %24 = sbr.rel (%p22) target = $region21
    $region20: #{hrnn_encoder_forward.2} parent=1 // pred_region
      %25 = vst [vmem:[#allocation2] sm:$0xff] 0.0
    $region21: #{hrnn_encoder_forward.2} parent=1 // pred_fallthru
      _
    %v26 = vld [vmem:[%s2] sm:$0xff]
    %v27 = vld [vmem:[%s2 + $0x8] sm:$0xf]
    %v28 = vld [vmem:[%s2 + $0xc] sm:$0xff]
    %v29 = vld [vmem:[%s2 + $0x14] sm:$0xf]
    %v30 = vld [vmem:[%s2 + $0x18] sm:$0xff]
    %v31 = vld [vmem:[%s2 + $0x20] sm:$0xf]
    %v32 = vld [vmem:[%s2 + $0x24] sm:$0xff]
    %v33 = vld [vmem:[%s2 + $0x2c] sm:$0xf]
    %v34 = vld [vmem:[%s2 + $0x30] sm:$0xff]
    %v35 = vld [vmem:[%s2 + $0x38] sm:$0xf]
    %v36 = vld [vmem:[%s2 + $0x3c] sm:$0xff]
    %v37 = vld [vmem:[%s2 + $0x44] sm:$0xf]
    %v38 = vld [vmem:[%s2 + $0x48] sm:$0xff]
    %v39 = vld [vmem:[%s2 + $0x50] sm:$0xf]
    %v40 = vld [vmem:[%s2 + $0x54] sm:$0xff]
    %v41 = vld [vmem:[%s2 + $0x5c] sm:$0xf]
    %v42 = vld [vmem:[%s2 + $0x60] sm:$0xff]
    %v43 = vld [vmem:[%s2 + $0x68] sm:$0xf]
    %v44 = vld [vmem:[%s2 + $0x6c] sm:$0xff]
    %v45 = vld [vmem:[%s2 + $0x74] sm:$0xf]
    %v46 = vld [vmem:[%s2 + $0x78] sm:$0xff]
    %v47 = vld [vmem:[%s2 + $0x80] sm:$0xf]
    %v48 = vld [vmem:[%s2 + $0x84] sm:$0xff]
    %v49 = vld [vmem:[%s2 + $0x8c] sm:$0xf]
    %v50 = vld [vmem:[%s2 + $0x90] sm:$0xff]
    %v51 = vld [vmem:[%s2 + $0x98] sm:$0xf]
    %v52 = vld [vmem:[%s2 + $0x9c] sm:$0xff]
    %v53 = vld [vmem:[%s2 + $0xa4] sm:$0xf]
    %v54 = vld [vmem:[%s2 + $0xa8] sm:$0xff]
    %v55 = vld [vmem:[%s2 + $0xb0] sm:$0xf]
    %v56 = vld [vmem:[%s2 + $0xb4] sm:$0xff]
    %v57 = vld [vmem:[%s2 + $0xbc] sm:$0xf]
    %v58 = vld [vmem:[%s3] sm:$0x7]
    %v59 = vld [vmem:[%s1] sm:$0xff]
    %s60 = smul.u32 0, 8
    %v61 = vld [vmem:[#allocation2] sm:$0xff]
    %v62 = vld [vmem:[%s0] sm:$0xff]
    %v63 = vld [vmem:[%s0 + $0x8] sm:$0xff]
    %v64 = vld [vmem:[%s0 + $0x10] sm:$0xff]
    %v65 = vpack.c.bf16 %v61, %v61
    %v67 = vlaneseq
    %v68 = vshrl.u32 %v67, 7
    %v69 = vsub.s32 0, %v68
    %v70 = vrot.slane %v58, %v69
    %v71 = vlaneseq
    %v72 = vshrl.u32 %v71, 7
    %v73 = vsub.s32 1, %v72
    %v74 = vrot.slane %v58, %v73
    %v75 = vlaneseq
    %v76 = vshrl.u32 %v75, 7
    %v77 = vsub.s32 2, %v76
    %v78 = vrot.slane %v58, %v77
    %v114 = vunpack.c.l.b16 %v26
    %v115 = vunpack.c.h.b16 %v26
    %v116 = vunpack.c.l.b16 %v27
    %v117 = vunpack.c.l.b16 %v28
    %v118 = vunpack.c.h.b16 %v28
    %v119 = vunpack.c.l.b16 %v29
    %v120 = vunpack.c.l.b16 %v30
    %v121 = vunpack.c.h.b16 %v30
    %v122 = vunpack.c.l.b16 %v31
    %v123 = vunpack.c.l.b16 %v32
    %v124 = vunpack.c.h.b16 %v32
    %v125 = vunpack.c.l.b16 %v33
    %v126 = vunpack.c.l.b16 %v34
    %v127 = vunpack.c.h.b16 %v34
    %v128 = vunpack.c.l.b16 %v35
    %v129 = vunpack.c.l.b16 %v36
    %v130 = vunpack.c.h.b16 %v36
    %v131 = vunpack.c.l.b16 %v37
    %v132 = vunpack.c.l.b16 %v38
    %v133 = vunpack.c.h.b16 %v38
    %v134 = vunpack.c.l.b16 %v39
    %v135 = vunpack.c.l.b16 %v40
    %v136 = vunpack.c.h.b16 %v40
    %v137 = vunpack.c.l.b16 %v41
    %v138 = vunpack.c.l.b16 %v42
    %v139 = vunpack.c.h.b16 %v42
    %v140 = vunpack.c.l.b16 %v43
    %v141 = vunpack.c.l.b16 %v44
    %v142 = vunpack.c.h.b16 %v44
    %v143 = vunpack.c.l.b16 %v45
    %v144 = vunpack.c.l.b16 %v46
    %v145 = vunpack.c.h.b16 %v46
    %v146 = vunpack.c.l.b16 %v47
    %v147 = vunpack.c.l.b16 %v48
    %v148 = vunpack.c.h.b16 %v48
    %v149 = vunpack.c.l.b16 %v49
    %v150 = vunpack.c.l.b16 %v50
    %v151 = vunpack.c.h.b16 %v50
    %v152 = vunpack.c.l.b16 %v51
    %v153 = vunpack.c.l.b16 %v52
    %v154 = vunpack.c.h.b16 %v52
    %v155 = vunpack.c.l.b16 %v53
    %v156 = vunpack.c.l.b16 %v54
    %v157 = vunpack.c.h.b16 %v54
    %v158 = vunpack.c.l.b16 %v55
    %v159 = vunpack.c.l.b16 %v56
    %v160 = vunpack.c.h.b16 %v56
    %v161 = vunpack.c.l.b16 %v57
    %v162 = vpack.c.b16 %v117, %v114
    %v163 = vpack.c.b16 %v118, %v115
    %v164 = vpack.c.b16 %v119, %v116
    %v165 = vpack.c.b16 %v123, %v120
    %v166 = vpack.c.b16 %v124, %v121
    %v167 = vpack.c.b16 %v125, %v122
    %v168 = vpack.c.b16 %v129, %v126
    %v169 = vpack.c.b16 %v130, %v127
    %v170 = vpack.c.b16 %v131, %v128
    %v171 = vpack.c.b16 %v135, %v132
    %v172 = vpack.c.b16 %v136, %v133
    %v173 = vpack.c.b16 %v137, %v134
    %v174 = vpack.c.b16 %v141, %v138
    %v175 = vpack.c.b16 %v142, %v139
    %v176 = vpack.c.b16 %v143, %v140
    %v177 = vpack.c.b16 %v147, %v144
    %v178 = vpack.c.b16 %v148, %v145
    %v179 = vpack.c.b16 %v149, %v146
    %v180 = vpack.c.b16 %v153, %v150
    %v181 = vpack.c.b16 %v154, %v151
    %v182 = vpack.c.b16 %v155, %v152
    %v183 = vpack.c.b16 %v159, %v156
    %v184 = vpack.c.b16 %v160, %v157
    %v185 = vpack.c.b16 %v161, %v158
    %210 = vmatprep.subr.bf16.mxu0 %v184
    %211 = vmatpush1.bf16.msra.mxu0 %v183
    %212 = vmatprep.subr.bf16.mxu0 %v181
    %213 = vmatpush1.bf16.msra.mxu0 %v180
    %214 = vmatprep.subr.bf16.mxu0 %v178
    %215 = vmatpush1.bf16.msra.mxu0 %v177
    %216 = vmatprep.subr.bf16.mxu0 %v175
    %217 = vmatpush1.bf16.msra.mxu0 %v174
    %218 = vmatprep.subr.bf16.mxu0 %v172
    %219 = vmatpush1.bf16.msra.mxu0 %v171
    %220 = vmatprep.subr.bf16.mxu0 %v169
    %221 = vmatpush1.bf16.msra.mxu0 %v168
    %222 = vmatprep.subr.bf16.mxu0 %v166
    %223 = vmatpush1.bf16.msra.mxu0 %v165
    %224 = vmatprep.subr.bf16.mxu0 %v163
    %225 = vmatpush1.bf16.msra.mxu0 %v162
    %226 = vmatprep.subr.bf16.mxu0 0
    %227 = vmatpush2.bf16.msra.mxu0 0
    %228 = vmatprep.subr.bf16.mxu0 0
    %229 = vmatpush2.bf16.msra.mxu0 0
    %230 = vmatprep.subr.bf16.mxu0 0
    %231 = vmatpush2.bf16.msra.mxu0 0
    %232 = vmatprep.subr.bf16.mxu0 0
    %233 = vmatpush2.bf16.msra.mxu0 0
    %234 = vmatprep.subr.bf16.mxu0 0
    %235 = vmatpush2.bf16.msra.mxu0 0
    %236 = vmatprep.subr.bf16.mxu0 0
    %237 = vmatpush2.bf16.msra.mxu0 0
    %238 = vmatprep.subr.bf16.mxu0 0
    %239 = vmatpush2.bf16.msra.mxu0 0
    %240 = vmatprep.subr.bf16.mxu0 0
    %241 = vmatpush2.bf16.msra.mxu0 0
    %242 = vmatprep.mubr.bf16.mxu0 0
    %243 = vmatmul.mubr.bf16.gmra.mxu0 %v65
    %v244 = vpop.f32.mrf.mxu0
    %v245 = vadd.f32 %v70, %v244
    %v246 = vpop.f32.mrf.mxu0
    %v247 = vadd.f32 %v74, %v246
    %v248 = vpop.f32.mrf.mxu0
    %v249 = vpop.f32.mrf.mxu0
    %250 = vdwg.mxu0
    %251 = vmatprep.subr.bf16.mxu0 0
    %252 = vmatpush1.bf16.msra.mxu0 %v185
    %253 = vmatprep.subr.bf16.mxu0 0
    %254 = vmatpush1.bf16.msra.mxu0 %v182
    %255 = vmatprep.subr.bf16.mxu0 0
    %256 = vmatpush1.bf16.msra.mxu0 %v179
    %257 = vmatprep.subr.bf16.mxu0 0
    %258 = vmatpush1.bf16.msra.mxu0 %v176
    %259 = vmatprep.subr.bf16.mxu0 0
    %260 = vmatpush1.bf16.msra.mxu0 %v173
    %261 = vmatprep.subr.bf16.mxu0 0
    %262 = vmatpush1.bf16.msra.mxu0 %v170
    %263 = vmatprep.subr.bf16.mxu0 0
    %264 = vmatpush1.bf16.msra.mxu0 %v167
    %265 = vmatprep.subr.bf16.mxu0 0
    %266 = vmatpush1.bf16.msra.mxu0 %v164
    %267 = vmatprep.subr.bf16.mxu0 0
    %268 = vmatpush2.bf16.msra.mxu0 0
    %269 = vmatprep.subr.bf16.mxu0 0
    %270 = vmatpush2.bf16.msra.mxu0 0
    %271 = vmatprep.subr.bf16.mxu0 0
    %272 = vmatpush2.bf16.msra.mxu0 0
    %273 = vmatprep.subr.bf16.mxu0 0
    %274 = vmatpush2.bf16.msra.mxu0 0
    %275 = vmatprep.subr.bf16.mxu0 0
    %276 = vmatpush2.bf16.msra.mxu0 0
    %277 = vmatprep.subr.bf16.mxu0 0
    %278 = vmatpush2.bf16.msra.mxu0 0
    %279 = vmatprep.subr.bf16.mxu0 0
    %280 = vmatpush2.bf16.msra.mxu0 0
    %281 = vmatprep.subr.bf16.mxu0 0
    %282 = vmatpush2.bf16.msra.mxu0 0
    %283 = vmatprep.mubr.bf16.mxu0 0
    %284 = vmatmul.mubr.bf16.gmra.mxu0 %v65
    %v285 = vpop.f32.mrf.mxu0
    %v286 = vadd.f32 %v78, %v285
    %v287 = vpop.f32.mrf.mxu0
    %v288 = vpop.f32.mrf.mxu0
    %v289 = vpop.f32.mrf.mxu0
    %290 = vdwg.mxu0
    %v291 = vadd.f32 %v62, %v245
    %v292 = vxor.u32 %v291, 2147483648
    %v293 = vmul.f32 %v292, 1.442695
    %v294 = vpow.pop %v293
    %v295 = vadd.f32 %v294, 1.0
    %v296 = vrcp.pop %v295
    %v297 = vmul.f32 1.0, %v296
    %v298 = vadd.f32 %v63, %v247
    %v299 = vxor.u32 %v298, 2147483648
    %v300 = vmul.f32 %v299, 1.442695
    %v301 = vpow.pop %v300
    %v302 = vadd.f32 %v301, 1.0
    %v303 = vrcp.pop %v302
    %v304 = vmul.f32 1.0, %v303
    %v305 = vmul.f32 %v297, %v286
    %v306 = vadd.f32 %v64, %v305
    %v307 = vtanh.pop %v306
    %v308 = vsub.f32 1.0, %v304
    %v309 = vmul.f32 %v308, %v307
    %v310 = vmul.f32 %v304, %v61
    %v311 = vadd.f32 %v309, %v310
    %v312 = vstv %s60
    %vm313 = vcmp.gt.s32.totalorder %v59, %v312
    %v314 = vsel %vm313, 1, 0
    %315 = vset.pattern.permute.xlu0 0
    %316 = vperm.xlu0 %315, %v314
    %v317 = vpop.permute.xlu0 %316
    %vm318 = vcmp.eq.s32.totalorder %v317, 1
    %v319 = vsel %vm318, %v311, 0.0
    %320 = vst [vmem:[#allocation3] sm:$0xff] %v319
    %v321 = vsel %vm318, %v311, %v61
    %s322 = scalar_lea.vmem %s0, 24
    %v323 = vld [vmem:[%s322] sm:$0xff]
    %v324 = vld [vmem:[%s322 + $0x8] sm:$0xff]
    %v325 = vld [vmem:[%s322 + $0x10] sm:$0xff]
    %v326 = vpack.c.bf16 %v321, %v321
    %327 = vmatprep.subr.bf16.mxu0 %v184
    %328 = vmatpush1.bf16.msra.mxu0 %v183
    %329 = vmatprep.subr.bf16.mxu0 %v181
    %330 = vmatpush1.bf16.msra.mxu0 %v180
    %331 = vmatprep.subr.bf16.mxu0 %v178
    %332 = vmatpush1.bf16.msra.mxu0 %v177
    %333 = vmatprep.subr.bf16.mxu0 %v175
    %334 = vmatpush1.bf16.msra.mxu0 %v174
    %335 = vmatprep.subr.bf16.mxu0 %v172
    %336 = vmatpush1.bf16.msra.mxu0 %v171
    %337 = vmatprep.subr.bf16.mxu0 %v169
    %338 = vmatpush1.bf16.msra.mxu0 %v168
    %339 = vmatprep.subr.bf16.mxu0 %v166
    %340 = vmatpush1.bf16.msra.mxu0 %v165
    %341 = vmatprep.subr.bf16.mxu0 %v163
    %342 = vmatpush1.bf16.msra.mxu0 %v162
    %343 = vmatprep.subr.bf16.mxu0 0
    %344 = vmatpush2.bf16.msra.mxu0 0
    %345 = vmatprep.subr.bf16.mxu0 0
    %346 = vmatpush2.bf16.msra.mxu0 0
    %347 = vmatprep.subr.bf16.mxu0 0
    %348 = vmatpush2.bf16.msra.mxu0 0
    %349 = vmatprep.subr.bf16.mxu0 0
    %350 = vmatpush2.bf16.msra.mxu0 0
    %351 = vmatprep.subr.bf16.mxu0 0
    %352 = vmatpush2.bf16.msra.mxu0 0
    %353 = vmatprep.subr.bf16.mxu0 0
    %354 = vmatpush2.bf16.msra.mxu0 0
    %355 = vmatprep.subr.bf16.mxu0 0
    %356 = vmatpush2.bf16.msra.mxu0 0
    %357 = vmatprep.subr.bf16.mxu0 0
    %358 = vmatpush2.bf16.msra.mxu0 0
    %359 = vmatprep.mubr.bf16.mxu0 0
    %360 = vmatmul.mubr.bf16.gmra.mxu0 %v326
    %v361 = vpop.f32.mrf.mxu0
    %v362 = vadd.f32 %v70, %v361
    %v363 = vpop.f32.mrf.mxu0
    %v364 = vadd.f32 %v74, %v363
    %v365 = vpop.f32.mrf.mxu0
    %v366 = vpop.f32.mrf.mxu0
    %367 = vdwg.mxu0
    %368 = vmatprep.subr.bf16.mxu0 0
    %369 = vmatpush1.bf16.msra.mxu0 %v185
    %370 = vmatprep.subr.bf16.mxu0 0
    %371 = vmatpush1.bf16.msra.mxu0 %v182
    %372 = vmatprep.subr.bf16.mxu0 0
    %373 = vmatpush1.bf16.msra.mxu0 %v179
    %374 = vmatprep.subr.bf16.mxu0 0
    %375 = vmatpush1.bf16.msra.mxu0 %v176
    %376 = vmatprep.subr.bf16.mxu0 0
    %377 = vmatpush1.bf16.msra.mxu0 %v173
    %378 = vmatprep.subr.bf16.mxu0 0
    %379 = vmatpush1.bf16.msra.mxu0 %v170
    %380 = vmatprep.subr.bf16.mxu0 0
    %381 = vmatpush1.bf16.msra.mxu0 %v167
    %382 = vmatprep.subr.bf16.mxu0 0
    %383 = vmatpush1.bf16.msra.mxu0 %v164
    %384 = vmatprep.subr.bf16.mxu0 0
    %385 = vmatpush2.bf16.msra.mxu0 0
    %386 = vmatprep.subr.bf16.mxu0 0
    %387 = vmatpush2.bf16.msra.mxu0 0
    %388 = vmatprep.subr.bf16.mxu0 0
    %389 = vmatpush2.bf16.msra.mxu0 0
    %390 = vmatprep.subr.bf16.mxu0 0
    %391 = vmatpush2.bf16.msra.mxu0 0
    %392 = vmatprep.subr.bf16.mxu0 0
    %393 = vmatpush2.bf16.msra.mxu0 0
    %394 = vmatprep.subr.bf16.mxu0 0
    %395 = vmatpush2.bf16.msra.mxu0 0
    %396 = vmatprep.subr.bf16.mxu0 0
    %397 = vmatpush2.bf16.msra.mxu0 0
    %398 = vmatprep.subr.bf16.mxu0 0
    %399 = vmatpush2.bf16.msra.mxu0 0
    %400 = vmatprep.mubr.bf16.mxu0 0
    %401 = vmatmul.mubr.bf16.gmra.mxu0 %v326
    %v402 = vpop.f32.mrf.mxu0
    %v403 = vadd.f32 %v78, %v402
    %v404 = vpop.f32.mrf.mxu0
    %v405 = vpop.f32.mrf.mxu0
    %v406 = vpop.f32.mrf.mxu0
    %407 = vdwg.mxu0
    %v408 = vadd.f32 %v323, %v362
    %v409 = vxor.u32 %v408, 2147483648
    %v410 = vmul.f32 %v409, 1.442695
    %v411 = vpow.pop %v410
    %v412 = vadd.f32 %v411, 1.0
    %v413 = vrcp.pop %v412
    %v414 = vmul.f32 1.0, %v413
    %v415 = vadd.f32 %v324, %v364
    %v416 = vxor.u32 %v415, 2147483648
    %v417 = vmul.f32 %v416, 1.442695
    %v418 = vpow.pop %v417
    %v419 = vadd.f32 %v418, 1.0
    %v420 = vrcp.pop %v419
    %v421 = vmul.f32 1.0, %v420
    %v422 = vmul.f32 %v414, %v403
    %v423 = vadd.f32 %v325, %v422
    %v424 = vtanh.pop %v423
    %v425 = vsub.f32 1.0, %v421
    %v426 = vmul.f32 %v425, %v424
    %v427 = vmul.f32 %v421, %v321
    %v428 = vadd.f32 %v426, %v427
    %s429 = sadd.s32 %s60, 1
    %v430 = vstv %s429
    %vm431 = vcmp.gt.s32.totalorder %v59, %v430
    %v432 = vsel %vm431, 1, 0
    %433 = vset.pattern.permute.xlu0 0
    %434 = vperm.xlu0 %433, %v432
    %v435 = vpop.permute.xlu0 %434
    %vm436 = vcmp.eq.s32.totalorder %v435, 1
    %v437 = vsel %vm436, %v428, 0.0
    %s438 = scalar_lea.vmem [#allocation3], 8
    %439 = vst [vmem:[%s438] sm:$0xff] %v437
    %v440 = vsel %vm436, %v428, %v321
    %s441 = scalar_lea.vmem %s0, 48
    %v442 = vld [vmem:[%s441] sm:$0xff]
    %v443 = vld [vmem:[%s441 + $0x8] sm:$0xff]
    %v444 = vld [vmem:[%s441 + $0x10] sm:$0xff]
    %v445 = vpack.c.bf16 %v440, %v440
    %446 = vmatprep.subr.bf16.mxu0 %v184
    %447 = vmatpush1.bf16.msra.mxu0 %v183
    %448 = vmatprep.subr.bf16.mxu0 %v181
    %449 = vmatpush1.bf16.msra.mxu0 %v180
    %450 = vmatprep.subr.bf16.mxu0 %v178
    %451 = vmatpush1.bf16.msra.mxu0 %v177
    %452 = vmatprep.subr.bf16.mxu0 %v175
    %453 = vmatpush1.bf16.msra.mxu0 %v174
    %454 = vmatprep.subr.bf16.mxu0 %v172
    %455 = vmatpush1.bf16.msra.mxu0 %v171
    %456 = vmatprep.subr.bf16.mxu0 %v169
    %457 = vmatpush1.bf16.msra.mxu0 %v168
    %458 = vmatprep.subr.bf16.mxu0 %v166
    %459 = vmatpush1.bf16.msra.mxu0 %v165
    %460 = vmatprep.subr.bf16.mxu0 %v163
    %461 = vmatpush1.bf16.msra.mxu0 %v162
    %462 = vmatprep.subr.bf16.mxu0 0
    %463 = vmatpush2.bf16.msra.mxu0 0
    %464 = vmatprep.subr.bf16.mxu0 0
    %465 = vmatpush2.bf16.msra.mxu0 0
    %466 = vmatprep.subr.bf16.mxu0 0
    %467 = vmatpush2.bf16.msra.mxu0 0
    %468 = vmatprep.subr.bf16.mxu0 0
    %469 = vmatpush2.bf16.msra.mxu0 0
    %470 = vmatprep.subr.bf16.mxu0 0
    %471 = vmatpush2.bf16.msra.mxu0 0
    %472 = vmatprep.subr.bf16.mxu0 0
    %473 = vmatpush2.bf16.msra.mxu0 0
    %474 = vmatprep.subr.bf16.mxu0 0
    %475 = vmatpush2.bf16.msra.mxu0 0
    %476 = vmatprep.subr.bf16.mxu0 0
    %477 = vmatpush2.bf16.msra.mxu0 0
    %478 = vmatprep.mubr.bf16.mxu0 0
    %479 = vmatmul.mubr.bf16.gmra.mxu0 %v445
    %v480 = vpop.f32.mrf.mxu0
    %v481 = vadd.f32 %v70, %v480
    %v482 = vpop.f32.mrf.mxu0
    %v483 = vadd.f32 %v74, %v482
    %v484 = vpop.f32.mrf.mxu0
    %v485 = vpop.f32.mrf.mxu0
    %486 = vdwg.mxu0
    %487 = vmatprep.subr.bf16.mxu0 0
    %488 = vmatpush1.bf16.msra.mxu0 %v185
    %489 = vmatprep.subr.bf16.mxu0 0
    %490 = vmatpush1.bf16.msra.mxu0 %v182
    %491 = vmatprep.subr.bf16.mxu0 0
    %492 = vmatpush1.bf16.msra.mxu0 %v179
    %493 = vmatprep.subr.bf16.mxu0 0
    %494 = vmatpush1.bf16.msra.mxu0 %v176
    %495 = vmatprep.subr.bf16.mxu0 0
    %496 = vmatpush1.bf16.msra.mxu0 %v173
    %497 = vmatprep.subr.bf16.mxu0 0
    %498 = vmatpush1.bf16.msra.mxu0 %v170
    %499 = vmatprep.subr.bf16.mxu0 0
    %500 = vmatpush1.bf16.msra.mxu0 %v167
    %501 = vmatprep.subr.bf16.mxu0 0
    %502 = vmatpush1.bf16.msra.mxu0 %v164
    %503 = vmatprep.subr.bf16.mxu0 0
    %504 = vmatpush2.bf16.msra.mxu0 0
    %505 = vmatprep.subr.bf16.mxu0 0
    %506 = vmatpush2.bf16.msra.mxu0 0
    %507 = vmatprep.subr.bf16.mxu0 0
    %508 = vmatpush2.bf16.msra.mxu0 0
    %509 = vmatprep.subr.bf16.mxu0 0
    %510 = vmatpush2.bf16.msra.mxu0 0
    %511 = vmatprep.subr.bf16.mxu0 0
    %512 = vmatpush2.bf16.msra.mxu0 0
    %513 = vmatprep.subr.bf16.mxu0 0
    %514 = vmatpush2.bf16.msra.mxu0 0
    %515 = vmatprep.subr.bf16.mxu0 0
    %516 = vmatpush2.bf16.msra.mxu0 0
    %517 = vmatprep.subr.bf16.mxu0 0
    %518 = vmatpush2.bf16.msra.mxu0 0
    %519 = vmatprep.mubr.bf16.mxu0 0
    %520 = vmatmul.mubr.bf16.gmra.mxu0 %v445
    %v521 = vpop.f32.mrf.mxu0
    %v522 = vadd.f32 %v78, %v521
    %v523 = vpop.f32.mrf.mxu0
    %v524 = vpop.f32.mrf.mxu0
    %v525 = vpop.f32.mrf.mxu0
    %526 = vdwg.mxu0
    %v527 = vadd.f32 %v442, %v481
    %v528 = vxor.u32 %v527, 2147483648
    %v529 = vmul.f32 %v528, 1.442695
    %v530 = vpow.pop %v529
    %v531 = vadd.f32 %v530, 1.0
    %v532 = vrcp.pop %v531
    %v533 = vmul.f32 1.0, %v532
    %v534 = vadd.f32 %v443, %v483
    %v535 = vxor.u32 %v534, 2147483648
    %v536 = vmul.f32 %v535, 1.442695
    %v537 = vpow.pop %v536
    %v538 = vadd.f32 %v537, 1.0
    %v539 = vrcp.pop %v538
    %v540 = vmul.f32 1.0, %v539
    %v541 = vmul.f32 %v533, %v522
    %v542 = vadd.f32 %v444, %v541
    %v543 = vtanh.pop %v542
    %v544 = vsub.f32 1.0, %v540
    %v545 = vmul.f32 %v544, %v543
    %v546 = vmul.f32 %v540, %v440
    %v547 = vadd.f32 %v545, %v546
    %s548 = sadd.s32 %s60, 2
    %v549 = vstv %s548
    %vm550 = vcmp.gt.s32.totalorder %v59, %v549
    %v551 = vsel %vm550, 1, 0
    %552 = vset.pattern.permute.xlu0 0
    %553 = vperm.xlu0 %552, %v551
    %v554 = vpop.permute.xlu0 %553
    %vm555 = vcmp.eq.s32.totalorder %v554, 1
    %v556 = vsel %vm555, %v547, 0.0
    %s557 = scalar_lea.vmem [#allocation3], 16
    %558 = vst [vmem:[%s557] sm:$0xff] %v556
    %v559 = vsel %vm555, %v547, %v440
    %s560 = scalar_lea.vmem %s0, 72
    %v561 = vld [vmem:[%s560] sm:$0xff]
    %v562 = vld [vmem:[%s560 + $0x8] sm:$0xff]
    %v563 = vld [vmem:[%s560 + $0x10] sm:$0xff]
    %v564 = vpack.c.bf16 %v559, %v559
    %565 = vmatprep.subr.bf16.mxu0 %v184
    %566 = vmatpush1.bf16.msra.mxu0 %v183
    %567 = vmatprep.subr.bf16.mxu0 %v181
    %568 = vmatpush1.bf16.msra.mxu0 %v180
    %569 = vmatprep.subr.bf16.mxu0 %v178
    %570 = vmatpush1.bf16.msra.mxu0 %v177
    %571 = vmatprep.subr.bf16.mxu0 %v175
    %572 = vmatpush1.bf16.msra.mxu0 %v174
    %573 = vmatprep.subr.bf16.mxu0 %v172
    %574 = vmatpush1.bf16.msra.mxu0 %v171
    %575 = vmatprep.subr.bf16.mxu0 %v169
    %576 = vmatpush1.bf16.msra.mxu0 %v168
    %577 = vmatprep.subr.bf16.mxu0 %v166
    %578 = vmatpush1.bf16.msra.mxu0 %v165
    %579 = vmatprep.subr.bf16.mxu0 %v163
    %580 = vmatpush1.bf16.msra.mxu0 %v162
    %581 = vmatprep.subr.bf16.mxu0 0
    %582 = vmatpush2.bf16.msra.mxu0 0
    %583 = vmatprep.subr.bf16.mxu0 0
    %584 = vmatpush2.bf16.msra.mxu0 0
    %585 = vmatprep.subr.bf16.mxu0 0
    %586 = vmatpush2.bf16.msra.mxu0 0
    %587 = vmatprep.subr.bf16.mxu0 0
    %588 = vmatpush2.bf16.msra.mxu0 0
    %589 = vmatprep.subr.bf16.mxu0 0
    %590 = vmatpush2.bf16.msra.mxu0 0
    %591 = vmatprep.subr.bf16.mxu0 0
    %592 = vmatpush2.bf16.msra.mxu0 0
    %593 = vmatprep.subr.bf16.mxu0 0
    %594 = vmatpush2.bf16.msra.mxu0 0
    %595 = vmatprep.subr.bf16.mxu0 0
    %596 = vmatpush2.bf16.msra.mxu0 0
    %597 = vmatprep.mubr.bf16.mxu0 0
    %598 = vmatmul.mubr.bf16.gmra.mxu0 %v564
    %v599 = vpop.f32.mrf.mxu0
    %v600 = vadd.f32 %v70, %v599
    %v601 = vpop.f32.mrf.mxu0
    %v602 = vadd.f32 %v74, %v601
    %v603 = vpop.f32.mrf.mxu0
    %v604 = vpop.f32.mrf.mxu0
    %605 = vdwg.mxu0
    %606 = vmatprep.subr.bf16.mxu0 0
    %607 = vmatpush1.bf16.msra.mxu0 %v185
    %608 = vmatprep.subr.bf16.mxu0 0
    %609 = vmatpush1.bf16.msra.mxu0 %v182
    %610 = vmatprep.subr.bf16.mxu0 0
    %611 = vmatpush1.bf16.msra.mxu0 %v179
    %612 = vmatprep.subr.bf16.mxu0 0
    %613 = vmatpush1.bf16.msra.mxu0 %v176
    %614 = vmatprep.subr.bf16.mxu0 0
    %615 = vmatpush1.bf16.msra.mxu0 %v173
    %616 = vmatprep.subr.bf16.mxu0 0
    %617 = vmatpush1.bf16.msra.mxu0 %v170
    %618 = vmatprep.subr.bf16.mxu0 0
    %619 = vmatpush1.bf16.msra.mxu0 %v167
    %620 = vmatprep.subr.bf16.mxu0 0
    %621 = vmatpush1.bf16.msra.mxu0 %v164
    %622 = vmatprep.subr.bf16.mxu0 0
    %623 = vmatpush2.bf16.msra.mxu0 0
    %624 = vmatprep.subr.bf16.mxu0 0
    %625 = vmatpush2.bf16.msra.mxu0 0
    %626 = vmatprep.subr.bf16.mxu0 0
    %627 = vmatpush2.bf16.msra.mxu0 0
    %628 = vmatprep.subr.bf16.mxu0 0
    %629 = vmatpush2.bf16.msra.mxu0 0
    %630 = vmatprep.subr.bf16.mxu0 0
    %631 = vmatpush2.bf16.msra.mxu0 0
    %632 = vmatprep.subr.bf16.mxu0 0
    %633 = vmatpush2.bf16.msra.mxu0 0
    %634 = vmatprep.subr.bf16.mxu0 0
    %635 = vmatpush2.bf16.msra.mxu0 0
    %636 = vmatprep.subr.bf16.mxu0 0
    %637 = vmatpush2.bf16.msra.mxu0 0
    %638 = vmatprep.mubr.bf16.mxu0 0
    %639 = vmatmul.mubr.bf16.gmra.mxu0 %v564
    %v640 = vpop.f32.mrf.mxu0
    %v641 = vadd.f32 %v78, %v640
    %v642 = vpop.f32.mrf.mxu0
    %v643 = vpop.f32.mrf.mxu0
    %v644 = vpop.f32.mrf.mxu0
    %645 = vdwg.mxu0
    %v646 = vadd.f32 %v561, %v600
    %v647 = vxor.u32 %v646, 2147483648
    %v648 = vmul.f32 %v647, 1.442695
    %v649 = vpow.pop %v648
    %v650 = vadd.f32 %v649, 1.0
    %v651 = vrcp.pop %v650
    %v652 = vmul.f32 1.0, %v651
    %v653 = vadd.f32 %v562, %v602
    %v654 = vxor.u32 %v653, 2147483648
    %v655 = vmul.f32 %v654, 1.442695
    %v656 = vpow.pop %v655
    %v657 = vadd.f32 %v656, 1.0
    %v658 = vrcp.pop %v657
    %v659 = vmul.f32 1.0, %v658
    %v660 = vmul.f32 %v652, %v641
    %v661 = vadd.f32 %v563, %v660
    %v662 = vtanh.pop %v661
    %v663 = vsub.f32 1.0, %v659
    %v664 = vmul.f32 %v663, %v662
    %v665 = vmul.f32 %v659, %v559
    %v666 = vadd.f32 %v664, %v665
    %s667 = sadd.s32 %s60, 3
    %v668 = vstv %s667
    %vm669 = vcmp.gt.s32.totalorder %v59, %v668
    %v670 = vsel %vm669, 1, 0
    %671 = vset.pattern.permute.xlu0 0
    %672 = vperm.xlu0 %671, %v670
    %v673 = vpop.permute.xlu0 %672
    %vm674 = vcmp.eq.s32.totalorder %v673, 1
    %v675 = vsel %vm674, %v666, 0.0
    %s676 = scalar_lea.vmem [#allocation3], 24
    %677 = vst [vmem:[%s676] sm:$0xff] %v675
    %v678 = vsel %vm674, %v666, %v559
    %s679 = scalar_lea.vmem %s0, 96
    %v680 = vld [vmem:[%s679] sm:$0xff]
    %v681 = vld [vmem:[%s679 + $0x8] sm:$0xff]
    %v682 = vld [vmem:[%s679 + $0x10] sm:$0xff]
    %v683 = vpack.c.bf16 %v678, %v678
    %684 = vmatprep.subr.bf16.mxu0 %v184
    %685 = vmatpush1.bf16.msra.mxu0 %v183
    %686 = vmatprep.subr.bf16.mxu0 %v181
    %687 = vmatpush1.bf16.msra.mxu0 %v180
    %688 = vmatprep.subr.bf16.mxu0 %v178
    %689 = vmatpush1.bf16.msra.mxu0 %v177
    %690 = vmatprep.subr.bf16.mxu0 %v175
    %691 = vmatpush1.bf16.msra.mxu0 %v174
    %692 = vmatprep.subr.bf16.mxu0 %v172
    %693 = vmatpush1.bf16.msra.mxu0 %v171
    %694 = vmatprep.subr.bf16.mxu0 %v169
    %695 = vmatpush1.bf16.msra.mxu0 %v168
    %696 = vmatprep.subr.bf16.mxu0 %v166
    %697 = vmatpush1.bf16.msra.mxu0 %v165
    %698 = vmatprep.subr.bf16.mxu0 %v163
    %699 = vmatpush1.bf16.msra.mxu0 %v162
    %700 = vmatprep.subr.bf16.mxu0 0
    %701 = vmatpush2.bf16.msra.mxu0 0
    %702 = vmatprep.subr.bf16.mxu0 0
    %703 = vmatpush2.bf16.msra.mxu0 0
    %704 = vmatprep.subr.bf16.mxu0 0
    %705 = vmatpush2.bf16.msra.mxu0 0
    %706 = vmatprep.subr.bf16.mxu0 0
    %707 = vmatpush2.bf16.msra.mxu0 0
    %708 = vmatprep.subr.bf16.mxu0 0
    %709 = vmatpush2.bf16.msra.mxu0 0
    %710 = vmatprep.subr.bf16.mxu0 0
    %711 = vmatpush2.bf16.msra.mxu0 0
    %712 = vmatprep.subr.bf16.mxu0 0
    %713 = vmatpush2.bf16.msra.mxu0 0
    %714 = vmatprep.subr.bf16.mxu0 0
    %715 = vmatpush2.bf16.msra.mxu0 0
    %716 = vmatprep.mubr.bf16.mxu0 0
    %717 = vmatmul.mubr.bf16.gmra.mxu0 %v683
    %v718 = vpop.f32.mrf.mxu0
    %v719 = vadd.f32 %v70, %v718
    %v720 = vpop.f32.mrf.mxu0
    %v721 = vadd.f32 %v74, %v720
    %v722 = vpop.f32.mrf.mxu0
    %v723 = vpop.f32.mrf.mxu0
    %724 = vdwg.mxu0
    %725 = vmatprep.subr.bf16.mxu0 0
    %726 = vmatpush1.bf16.msra.mxu0 %v185
    %727 = vmatprep.subr.bf16.mxu0 0
    %728 = vmatpush1.bf16.msra.mxu0 %v182
    %729 = vmatprep.subr.bf16.mxu0 0
    %730 = vmatpush1.bf16.msra.mxu0 %v179
    %731 = vmatprep.subr.bf16.mxu0 0
    %732 = vmatpush1.bf16.msra.mxu0 %v176
    %733 = vmatprep.subr.bf16.mxu0 0
    %734 = vmatpush1.bf16.msra.mxu0 %v173
    %735 = vmatprep.subr.bf16.mxu0 0
    %736 = vmatpush1.bf16.msra.mxu0 %v170
    %737 = vmatprep.subr.bf16.mxu0 0
    %738 = vmatpush1.bf16.msra.mxu0 %v167
    %739 = vmatprep.subr.bf16.mxu0 0
    %740 = vmatpush1.bf16.msra.mxu0 %v164
    %741 = vmatprep.subr.bf16.mxu0 0
    %742 = vmatpush2.bf16.msra.mxu0 0
    %743 = vmatprep.subr.bf16.mxu0 0
    %744 = vmatpush2.bf16.msra.mxu0 0
    %745 = vmatprep.subr.bf16.mxu0 0
    %746 = vmatpush2.bf16.msra.mxu0 0
    %747 = vmatprep.subr.bf16.mxu0 0
    %748 = vmatpush2.bf16.msra.mxu0 0
    %749 = vmatprep.subr.bf16.mxu0 0
    %750 = vmatpush2.bf16.msra.mxu0 0
    %751 = vmatprep.subr.bf16.mxu0 0
    %752 = vmatpush2.bf16.msra.mxu0 0
    %753 = vmatprep.subr.bf16.mxu0 0
    %754 = vmatpush2.bf16.msra.mxu0 0
    %755 = vmatprep.subr.bf16.mxu0 0
    %756 = vmatpush2.bf16.msra.mxu0 0
    %757 = vmatprep.mubr.bf16.mxu0 0
    %758 = vmatmul.mubr.bf16.gmra.mxu0 %v683
    %v759 = vpop.f32.mrf.mxu0
    %v760 = vadd.f32 %v78, %v759
    %v761 = vpop.f32.mrf.mxu0
    %v762 = vpop.f32.mrf.mxu0
    %v763 = vpop.f32.mrf.mxu0
    %764 = vdwg.mxu0
    %v765 = vadd.f32 %v680, %v719
    %v766 = vxor.u32 %v765, 2147483648
    %v767 = vmul.f32 %v766, 1.442695
    %v768 = vpow.pop %v767
    %v769 = vadd.f32 %v768, 1.0
    %v770 = vrcp.pop %v769
    %v771 = vmul.f32 1.0, %v770
    %v772 = vadd.f32 %v681, %v721
    %v773 = vxor.u32 %v772, 2147483648
    %v774 = vmul.f32 %v773, 1.442695
    %v775 = vpow.pop %v774
    %v776 = vadd.f32 %v775, 1.0
    %v777 = vrcp.pop %v776
    %v778 = vmul.f32 1.0, %v777
    %v779 = vmul.f32 %v771, %v760
    %v780 = vadd.f32 %v682, %v779
    %v781 = vtanh.pop %v780
    %v782 = vsub.f32 1.0, %v778
    %v783 = vmul.f32 %v782, %v781
    %v784 = vmul.f32 %v778, %v678
    %v785 = vadd.f32 %v783, %v784
    %s786 = sadd.s32 %s60, 4
    %v787 = vstv %s786
    %vm788 = vcmp.gt.s32.totalorder %v59, %v787
    %v789 = vsel %vm788, 1, 0
    %790 = vset.pattern.permute.xlu0 0
    %791 = vperm.xlu0 %790, %v789
    %v792 = vpop.permute.xlu0 %791
    %vm793 = vcmp.eq.s32.totalorder %v792, 1
    %v794 = vsel %vm793, %v785, 0.0
    %s795 = scalar_lea.vmem [#allocation3], 32
    %796 = vst [vmem:[%s795] sm:$0xff] %v794
    %v797 = vsel %vm793, %v785, %v678
    %s798 = scalar_lea.vmem %s0, 120
    %v799 = vld [vmem:[%s798] sm:$0xff]
    %v800 = vld [vmem:[%s798 + $0x8] sm:$0xff]
    %v801 = vld [vmem:[%s798 + $0x10] sm:$0xff]
    %v802 = vpack.c.bf16 %v797, %v797
    %803 = vmatprep.subr.bf16.mxu0 %v184
    %804 = vmatpush1.bf16.msra.mxu0 %v183
    %805 = vmatprep.subr.bf16.mxu0 %v181
    %806 = vmatpush1.bf16.msra.mxu0 %v180
    %807 = vmatprep.subr.bf16.mxu0 %v178
    %808 = vmatpush1.bf16.msra.mxu0 %v177
    %809 = vmatprep.subr.bf16.mxu0 %v175
    %810 = vmatpush1.bf16.msra.mxu0 %v174
    %811 = vmatprep.subr.bf16.mxu0 %v172
    %812 = vmatpush1.bf16.msra.mxu0 %v171
    %813 = vmatprep.subr.bf16.mxu0 %v169
    %814 = vmatpush1.bf16.msra.mxu0 %v168
    %815 = vmatprep.subr.bf16.mxu0 %v166
    %816 = vmatpush1.bf16.msra.mxu0 %v165
    %817 = vmatprep.subr.bf16.mxu0 %v163
    %818 = vmatpush1.bf16.msra.mxu0 %v162
    %819 = vmatprep.subr.bf16.mxu0 0
    %820 = vmatpush2.bf16.msra.mxu0 0
    %821 = vmatprep.subr.bf16.mxu0 0
    %822 = vmatpush2.bf16.msra.mxu0 0
    %823 = vmatprep.subr.bf16.mxu0 0
    %824 = vmatpush2.bf16.msra.mxu0 0
    %825 = vmatprep.subr.bf16.mxu0 0
    %826 = vmatpush2.bf16.msra.mxu0 0
    %827 = vmatprep.subr.bf16.mxu0 0
    %828 = vmatpush2.bf16.msra.mxu0 0
    %829 = vmatprep.subr.bf16.mxu0 0
    %830 = vmatpush2.bf16.msra.mxu0 0
    %831 = vmatprep.subr.bf16.mxu0 0
    %832 = vmatpush2.bf16.msra.mxu0 0
    %833 = vmatprep.subr.bf16.mxu0 0
    %834 = vmatpush2.bf16.msra.mxu0 0
    %835 = vmatprep.mubr.bf16.mxu0 0
    %836 = vmatmul.mubr.bf16.gmra.mxu0 %v802
    %v837 = vpop.f32.mrf.mxu0
    %v838 = vadd.f32 %v70, %v837
    %v839 = vpop.f32.mrf.mxu0
    %v840 = vadd.f32 %v74, %v839
    %v841 = vpop.f32.mrf.mxu0
    %v842 = vpop.f32.mrf.mxu0
    %843 = vdwg.mxu0
    %844 = vmatprep.subr.bf16.mxu0 0
    %845 = vmatpush1.bf16.msra.mxu0 %v185
    %846 = vmatprep.subr.bf16.mxu0 0
    %847 = vmatpush1.bf16.msra.mxu0 %v182
    %848 = vmatprep.subr.bf16.mxu0 0
    %849 = vmatpush1.bf16.msra.mxu0 %v179
    %850 = vmatprep.subr.bf16.mxu0 0
    %851 = vmatpush1.bf16.msra.mxu0 %v176
    %852 = vmatprep.subr.bf16.mxu0 0
    %853 = vmatpush1.bf16.msra.mxu0 %v173
    %854 = vmatprep.subr.bf16.mxu0 0
    %855 = vmatpush1.bf16.msra.mxu0 %v170
    %856 = vmatprep.subr.bf16.mxu0 0
    %857 = vmatpush1.bf16.msra.mxu0 %v167
    %858 = vmatprep.subr.bf16.mxu0 0
    %859 = vmatpush1.bf16.msra.mxu0 %v164
    %860 = vmatprep.subr.bf16.mxu0 0
    %861 = vmatpush2.bf16.msra.mxu0 0
    %862 = vmatprep.subr.bf16.mxu0 0
    %863 = vmatpush2.bf16.msra.mxu0 0
    %864 = vmatprep.subr.bf16.mxu0 0
    %865 = vmatpush2.bf16.msra.mxu0 0
    %866 = vmatprep.subr.bf16.mxu0 0
    %867 = vmatpush2.bf16.msra.mxu0 0
    %868 = vmatprep.subr.bf16.mxu0 0
    %869 = vmatpush2.bf16.msra.mxu0 0
    %870 = vmatprep.subr.bf16.mxu0 0
    %871 = vmatpush2.bf16.msra.mxu0 0
    %872 = vmatprep.subr.bf16.mxu0 0
    %873 = vmatpush2.bf16.msra.mxu0 0
    %874 = vmatprep.subr.bf16.mxu0 0
    %875 = vmatpush2.bf16.msra.mxu0 0
    %876 = vmatprep.mubr.bf16.mxu0 0
    %877 = vmatmul.mubr.bf16.gmra.mxu0 %v802
    %v878 = vpop.f32.mrf.mxu0
    %v879 = vadd.f32 %v78, %v878
    %v880 = vpop.f32.mrf.mxu0
    %v881 = vpop.f32.mrf.mxu0
    %v882 = vpop.f32.mrf.mxu0
    %883 = vdwg.mxu0
    %v884 = vadd.f32 %v799, %v838
    %v885 = vxor.u32 %v884, 2147483648
    %v886 = vmul.f32 %v885, 1.442695
    %v887 = vpow.pop %v886
    %v888 = vadd.f32 %v887, 1.0
    %v889 = vrcp.pop %v888
    %v890 = vmul.f32 1.0, %v889
    %v891 = vadd.f32 %v800, %v840
    %v892 = vxor.u32 %v891, 2147483648
    %v893 = vmul.f32 %v892, 1.442695
    %v894 = vpow.pop %v893
    %v895 = vadd.f32 %v894, 1.0
    %v896 = vrcp.pop %v895
    %v897 = vmul.f32 1.0, %v896
    %v898 = vmul.f32 %v890, %v879
    %v899 = vadd.f32 %v801, %v898
    %v900 = vtanh.pop %v899
    %v901 = vsub.f32 1.0, %v897
    %v902 = vmul.f32 %v901, %v900
    %v903 = vmul.f32 %v897, %v797
    %v904 = vadd.f32 %v902, %v903
    %s905 = sadd.s32 %s60, 5
    %v906 = vstv %s905
    %vm907 = vcmp.gt.s32.totalorder %v59, %v906
    %v908 = vsel %vm907, 1, 0
    %909 = vset.pattern.permute.xlu0 0
    %910 = vperm.xlu0 %909, %v908
    %v911 = vpop.permute.xlu0 %910
    %vm912 = vcmp.eq.s32.totalorder %v911, 1
    %v913 = vsel %vm912, %v904, 0.0
    %s914 = scalar_lea.vmem [#allocation3], 40
    %915 = vst [vmem:[%s914] sm:$0xff] %v913
    %v916 = vsel %vm912, %v904, %v797
    %s917 = scalar_lea.vmem %s0, 144
    %v918 = vld [vmem:[%s917] sm:$0xff]
    %v919 = vld [vmem:[%s917 + $0x8] sm:$0xff]
    %v920 = vld [vmem:[%s917 + $0x10] sm:$0xff]
    %v921 = vpack.c.bf16 %v916, %v916
    %922 = vmatprep.subr.bf16.mxu0 %v184
    %923 = vmatpush1.bf16.msra.mxu0 %v183
    %924 = vmatprep.subr.bf16.mxu0 %v181
    %925 = vmatpush1.bf16.msra.mxu0 %v180
    %926 = vmatprep.subr.bf16.mxu0 %v178
    %927 = vmatpush1.bf16.msra.mxu0 %v177
    %928 = vmatprep.subr.bf16.mxu0 %v175
    %929 = vmatpush1.bf16.msra.mxu0 %v174
    %930 = vmatprep.subr.bf16.mxu0 %v172
    %931 = vmatpush1.bf16.msra.mxu0 %v171
    %932 = vmatprep.subr.bf16.mxu0 %v169
    %933 = vmatpush1.bf16.msra.mxu0 %v168
    %934 = vmatprep.subr.bf16.mxu0 %v166
    %935 = vmatpush1.bf16.msra.mxu0 %v165
    %936 = vmatprep.subr.bf16.mxu0 %v163
    %937 = vmatpush1.bf16.msra.mxu0 %v162
    %938 = vmatprep.subr.bf16.mxu0 0
    %939 = vmatpush2.bf16.msra.mxu0 0
    %940 = vmatprep.subr.bf16.mxu0 0
    %941 = vmatpush2.bf16.msra.mxu0 0
    %942 = vmatprep.subr.bf16.mxu0 0
    %943 = vmatpush2.bf16.msra.mxu0 0
    %944 = vmatprep.subr.bf16.mxu0 0
    %945 = vmatpush2.bf16.msra.mxu0 0
    %946 = vmatprep.subr.bf16.mxu0 0
    %947 = vmatpush2.bf16.msra.mxu0 0
    %948 = vmatprep.subr.bf16.mxu0 0
    %949 = vmatpush2.bf16.msra.mxu0 0
    %950 = vmatprep.subr.bf16.mxu0 0
    %951 = vmatpush2.bf16.msra.mxu0 0
    %952 = vmatprep.subr.bf16.mxu0 0
    %953 = vmatpush2.bf16.msra.mxu0 0
    %954 = vmatprep.mubr.bf16.mxu0 0
    %955 = vmatmul.mubr.bf16.gmra.mxu0 %v921
    %v956 = vpop.f32.mrf.mxu0
    %v957 = vadd.f32 %v70, %v956
    %v958 = vpop.f32.mrf.mxu0
    %v959 = vadd.f32 %v74, %v958
    %v960 = vpop.f32.mrf.mxu0
    %v961 = vpop.f32.mrf.mxu0
    %962 = vdwg.mxu0
    %963 = vmatprep.subr.bf16.mxu0 0
    %964 = vmatpush1.bf16.msra.mxu0 %v185
    %965 = vmatprep.subr.bf16.mxu0 0
    %966 = vmatpush1.bf16.msra.mxu0 %v182
    %967 = vmatprep.subr.bf16.mxu0 0
    %968 = vmatpush1.bf16.msra.mxu0 %v179
    %969 = vmatprep.subr.bf16.mxu0 0
    %970 = vmatpush1.bf16.msra.mxu0 %v176
    %971 = vmatprep.subr.bf16.mxu0 0
    %972 = vmatpush1.bf16.msra.mxu0 %v173
    %973 = vmatprep.subr.bf16.mxu0 0
    %974 = vmatpush1.bf16.msra.mxu0 %v170
    %975 = vmatprep.subr.bf16.mxu0 0
    %976 = vmatpush1.bf16.msra.mxu0 %v167
    %977 = vmatprep.subr.bf16.mxu0 0
    %978 = vmatpush1.bf16.msra.mxu0 %v164
    %979 = vmatprep.subr.bf16.mxu0 0
    %980 = vmatpush2.bf16.msra.mxu0 0
    %981 = vmatprep.subr.bf16.mxu0 0
    %982 = vmatpush2.bf16.msra.mxu0 0
    %983 = vmatprep.subr.bf16.mxu0 0
    %984 = vmatpush2.bf16.msra.mxu0 0
    %985 = vmatprep.subr.bf16.mxu0 0
    %986 = vmatpush2.bf16.msra.mxu0 0
    %987 = vmatprep.subr.bf16.mxu0 0
    %988 = vmatpush2.bf16.msra.mxu0 0
    %989 = vmatprep.subr.bf16.mxu0 0
    %990 = vmatpush2.bf16.msra.mxu0 0
    %991 = vmatprep.subr.bf16.mxu0 0
    %992 = vmatpush2.bf16.msra.mxu0 0
    %993 = vmatprep.subr.bf16.mxu0 0
    %994 = vmatpush2.bf16.msra.mxu0 0
    %995 = vmatprep.mubr.bf16.mxu0 0
    %996 = vmatmul.mubr.bf16.gmra.mxu0 %v921
    %v997 = vpop.f32.mrf.mxu0
    %v998 = vadd.f32 %v78, %v997
    %v999 = vpop.f32.mrf.mxu0
    %v1000 = vpop.f32.mrf.mxu0
    %v1001 = vpop.f32.mrf.mxu0
    %1002 = vdwg.mxu0
    %v1003 = vadd.f32 %v918, %v957
    %v1004 = vxor.u32 %v1003, 2147483648
    %v1005 = vmul.f32 %v1004, 1.442695
    %v1006 = vpow.pop %v1005
    %v1007 = vadd.f32 %v1006, 1.0
    %v1008 = vrcp.pop %v1007
    %v1009 = vmul.f32 1.0, %v1008
    %v1010 = vadd.f32 %v919, %v959
    %v1011 = vxor.u32 %v1010, 2147483648
    %v1012 = vmul.f32 %v1011, 1.442695
    %v1013 = vpow.pop %v1012
    %v1014 = vadd.f32 %v1013, 1.0
    %v1015 = vrcp.pop %v1014
    %v1016 = vmul.f32 1.0, %v1015
    %v1017 = vmul.f32 %v1009, %v998
    %v1018 = vadd.f32 %v920, %v1017
    %v1019 = vtanh.pop %v1018
    %v1020 = vsub.f32 1.0, %v1016
    %v1021 = vmul.f32 %v1020, %v1019
    %v1022 = vmul.f32 %v1016, %v916
    %v1023 = vadd.f32 %v1021, %v1022
    %s1024 = sadd.s32 %s60, 6
    %v1025 = vstv %s1024
    %vm1026 = vcmp.gt.s32.totalorder %v59, %v1025
    %v1027 = vsel %vm1026, 1, 0
    %1028 = vset.pattern.permute.xlu0 0
    %1029 = vperm.xlu0 %1028, %v1027
    %v1030 = vpop.permute.xlu0 %1029
    %vm1031 = vcmp.eq.s32.totalorder %v1030, 1
    %v1032 = vsel %vm1031, %v1023, 0.0
    %s1033 = scalar_lea.vmem [#allocation3], 48
    %1034 = vst [vmem:[%s1033] sm:$0xff] %v1032
    %v1035 = vsel %vm1031, %v1023, %v916
    %s1036 = scalar_lea.vmem %s0, 168
    %v1037 = vld [vmem:[%s1036] sm:$0xff]
    %v1038 = vld [vmem:[%s1036 + $0x8] sm:$0xff]
    %v1039 = vld [vmem:[%s1036 + $0x10] sm:$0xff]
    %v1040 = vpack.c.bf16 %v1035, %v1035
    %1041 = vmatprep.subr.bf16.mxu0 %v184
    %1042 = vmatpush1.bf16.msra.mxu0 %v183
    %1043 = vmatprep.subr.bf16.mxu0 %v181
    %1044 = vmatpush1.bf16.msra.mxu0 %v180
    %1045 = vmatprep.subr.bf16.mxu0 %v178
    %1046 = vmatpush1.bf16.msra.mxu0 %v177
    %1047 = vmatprep.subr.bf16.mxu0 %v175
    %1048 = vmatpush1.bf16.msra.mxu0 %v174
    %1049 = vmatprep.subr.bf16.mxu0 %v172
    %1050 = vmatpush1.bf16.msra.mxu0 %v171
    %1051 = vmatprep.subr.bf16.mxu0 %v169
    %1052 = vmatpush1.bf16.msra.mxu0 %v168
    %1053 = vmatprep.subr.bf16.mxu0 %v166
    %1054 = vmatpush1.bf16.msra.mxu0 %v165
    %1055 = vmatprep.subr.bf16.mxu0 %v163
    %1056 = vmatpush1.bf16.msra.mxu0 %v162
    %1057 = vmatprep.subr.bf16.mxu0 0
    %1058 = vmatpush2.bf16.msra.mxu0 0
    %1059 = vmatprep.subr.bf16.mxu0 0
    %1060 = vmatpush2.bf16.msra.mxu0 0
    %1061 = vmatprep.subr.bf16.mxu0 0
    %1062 = vmatpush2.bf16.msra.mxu0 0
    %1063 = vmatprep.subr.bf16.mxu0 0
    %1064 = vmatpush2.bf16.msra.mxu0 0
    %1065 = vmatprep.subr.bf16.mxu0 0
    %1066 = vmatpush2.bf16.msra.mxu0 0
    %1067 = vmatprep.subr.bf16.mxu0 0
    %1068 = vmatpush2.bf16.msra.mxu0 0
    %1069 = vmatprep.subr.bf16.mxu0 0
    %1070 = vmatpush2.bf16.msra.mxu0 0
    %1071 = vmatprep.subr.bf16.mxu0 0
    %1072 = vmatpush2.bf16.msra.mxu0 0
    %1073 = vmatprep.mubr.bf16.mxu0 0
    %1074 = vmatmul.mubr.bf16.gmra.mxu0 %v1040
    %v1075 = vpop.f32.mrf.mxu0
    %v1076 = vadd.f32 %v70, %v1075
    %v1077 = vpop.f32.mrf.mxu0
    %v1078 = vadd.f32 %v74, %v1077
    %v1079 = vpop.f32.mrf.mxu0
    %v1080 = vpop.f32.mrf.mxu0
    %1081 = vdwg.mxu0
    %1082 = vmatprep.subr.bf16.mxu0 0
    %1083 = vmatpush1.bf16.msra.mxu0 %v185
    %1084 = vmatprep.subr.bf16.mxu0 0
    %1085 = vmatpush1.bf16.msra.mxu0 %v182
    %1086 = vmatprep.subr.bf16.mxu0 0
    %1087 = vmatpush1.bf16.msra.mxu0 %v179
    %1088 = vmatprep.subr.bf16.mxu0 0
    %1089 = vmatpush1.bf16.msra.mxu0 %v176
    %1090 = vmatprep.subr.bf16.mxu0 0
    %1091 = vmatpush1.bf16.msra.mxu0 %v173
    %1092 = vmatprep.subr.bf16.mxu0 0
    %1093 = vmatpush1.bf16.msra.mxu0 %v170
    %1094 = vmatprep.subr.bf16.mxu0 0
    %1095 = vmatpush1.bf16.msra.mxu0 %v167
    %1096 = vmatprep.subr.bf16.mxu0 0
    %1097 = vmatpush1.bf16.msra.mxu0 %v164
    %1098 = vmatprep.subr.bf16.mxu0 0
    %1099 = vmatpush2.bf16.msra.mxu0 0
    %1100 = vmatprep.subr.bf16.mxu0 0
    %1101 = vmatpush2.bf16.msra.mxu0 0
    %1102 = vmatprep.subr.bf16.mxu0 0
    %1103 = vmatpush2.bf16.msra.mxu0 0
    %1104 = vmatprep.subr.bf16.mxu0 0
    %1105 = vmatpush2.bf16.msra.mxu0 0
    %1106 = vmatprep.subr.bf16.mxu0 0
    %1107 = vmatpush2.bf16.msra.mxu0 0
    %1108 = vmatprep.subr.bf16.mxu0 0
    %1109 = vmatpush2.bf16.msra.mxu0 0
    %1110 = vmatprep.subr.bf16.mxu0 0
    %1111 = vmatpush2.bf16.msra.mxu0 0
    %1112 = vmatprep.subr.bf16.mxu0 0
    %1113 = vmatpush2.bf16.msra.mxu0 0
    %1114 = vmatprep.mubr.bf16.mxu0 0
    %1115 = vmatmul.mubr.bf16.gmra.mxu0 %v1040
    %v1116 = vpop.f32.mrf.mxu0
    %v1117 = vadd.f32 %v78, %v1116
    %v1118 = vpop.f32.mrf.mxu0
    %v1119 = vpop.f32.mrf.mxu0
    %v1120 = vpop.f32.mrf.mxu0
    %1121 = vdwg.mxu0
    %v1122 = vadd.f32 %v1037, %v1076
    %v1123 = vxor.u32 %v1122, 2147483648
    %v1124 = vmul.f32 %v1123, 1.442695
    %v1125 = vpow.pop %v1124
    %v1126 = vadd.f32 %v1125, 1.0
    %v1127 = vrcp.pop %v1126
    %v1128 = vmul.f32 1.0, %v1127
    %v1129 = vadd.f32 %v1038, %v1078
    %v1130 = vxor.u32 %v1129, 2147483648
    %v1131 = vmul.f32 %v1130, 1.442695
    %v1132 = vpow.pop %v1131
    %v1133 = vadd.f32 %v1132, 1.0
    %v1134 = vrcp.pop %v1133
    %v1135 = vmul.f32 1.0, %v1134
    %v1136 = vmul.f32 %v1128, %v1117
    %v1137 = vadd.f32 %v1039, %v1136
    %v1138 = vtanh.pop %v1137
    %v1139 = vsub.f32 1.0, %v1135
    %v1140 = vmul.f32 %v1139, %v1138
    %v1141 = vmul.f32 %v1135, %v1035
    %v1142 = vadd.f32 %v1140, %v1141
    %s1143 = sadd.s32 %s60, 7
    %v1144 = vstv %s1143
    %vm1145 = vcmp.gt.s32.totalorder %v59, %v1144
    %v1146 = vsel %vm1145, 1, 0
    %1147 = vset.pattern.permute.xlu0 0
    %1148 = vperm.xlu0 %1147, %v1146
    %v1149 = vpop.permute.xlu0 %1148
    %vm1150 = vcmp.eq.s32.totalorder %v1149, 1
    %v1151 = vsel %vm1150, %v1142, 0.0
    %s1152 = scalar_lea.vmem [#allocation3], 56
    %1153 = vst [vmem:[%s1152] sm:$0xff] %v1151
    %v1154 = vsel %vm1150, %v1142, %v1035
    %1155 = vst [vmem:[#allocation2] sm:$0xff] %v1154
    // Predicated region
    $region22: #{hrnn_encoder_forward.2} parent=1 // pred_check
      %p1156 = pneg %p21
    $region23: #{hrnn_encoder_forward.2} parent=1 // pred_check_branch
      %1158 = sbr.rel (%p1156) target = $region25
    $region24: #{hrnn_encoder_forward.2} parent=1 // pred_region
      %1159 = vst [vmem:[%s5] sm:$0xff] %v1154
    $region25: #{hrnn_encoder_forward.2} parent=1 // pred_fallthru
      _
    // Predicated region
    $region26: #{hrnn_encoder_forward.2} parent=1 // pred_check
      _
    $region27: #{hrnn_encoder_forward.2} parent=1 // pred_check_branch
      %1161 = sbr.rel (0) target = $region29
    $region28: #{hrnn_encoder_forward.2} parent=1 // pred_region
      %s1163 = ssub.s32 1024, 1024
      %1164 = vsyncadd [#allocation4], %s1163
      %s1165 = sshll.u32 [#allocation3], 4
      %s1166 = int_to_ptr.vmem [resolvable:$true] %s1165
      %1171 = dma.vmem_to_hbm [thread:$0]  %s1166, 1024, %s4, [#allocation4], 128, 128, 8
    $region29: #{hrnn_encoder_forward.2} parent=1 // pred_fallthru
      _
    // Predicated region
    $region30: #{hrnn_encoder_forward.2} parent=1 // pred_check
      _
    $region31: #{hrnn_encoder_forward.2} parent=1 // pred_check_branch
      %1173 = sbr.rel (0) target = $region33
    $region32: #{hrnn_encoder_forward.2} parent=1 // pred_region
      _
    $region33: #{hrnn_encoder_forward.2} parent=1 // pred_fallthru
      _
    // Predicated region
    $region34: #{hrnn_encoder_forward.2} parent=1 // pred_check
      _
    $region35: #{hrnn_encoder_forward.2} parent=1 // pred_check_branch
      %1175 = sbr.rel (0) target = $region37
    $region36: #{hrnn_encoder_forward.2} parent=1 // pred_region
      %1176 = dma.done [#allocation4], 1024
    $region37: #{hrnn_encoder_forward.2} parent=1 // pred_fallthru
      _
    // Predicated region
    $region38: #{hrnn_encoder_forward.2} parent=1 // pred_check
      _
    $region39: #{hrnn_encoder_forward.2} parent=1 // pred_check_branch
      %1178 = sbr.rel (0) target = $region41
    $region40: #{hrnn_encoder_forward.2} parent=1 // pred_region
      _
    $region41: #{hrnn_encoder_forward.2} parent=1 // pred_fallthru
      _
    %1179 = vsyncpa [#allocation4], 1

</llo_original>
